<compile_context>
chip_gen: v5e
topology: v5e:2x2
jax: 0.10.0
libtpu: 0.0.40
codegen_flags: <defaults>
</compile_context>

<pallas_src>
import functools

import jax
import jax.numpy as jnp
from jax.experimental import pallas as pl
from jax.experimental.pallas import tpu as pltpu

EPS = 1e-5  # torch.nn.BatchNorm2d default eps


# ---------------------------------------------------------------------------
# Pallas kernels
# ---------------------------------------------------------------------------

def _conv_bn_act_stats_kernel(p_ref, scale_ref, shift_ref, alpha_ref, w_ref, b_ref,
                              y_ref, s_ref, sq_ref):
    """y = PReLU(p * scale + shift) @ W + b, fused with per-channel sum / sum-of-squares of the
    pre-bias accumulator (feeds the next BatchNorm).  The affine + PReLU and the stats run in
    f32; the MXU operands are the (narrow) compute dtype with f32 accumulation."""
    @pl.when(pl.program_id(1) == 0)
    def _():
        s_ref[...] = jnp.zeros_like(s_ref)
        sq_ref[...] = jnp.zeros_like(sq_ref)

    z = p_ref[...].astype(jnp.float32) * scale_ref[...] + shift_ref[...]
    a = jnp.where(z >= 0, z, alpha_ref[...] * z)
    d = jnp.dot(a.astype(w_ref.dtype), w_ref[...], preferred_element_type=jnp.float32)
    y_ref[...] = (d + b_ref[...]).astype(y_ref.dtype)
    s_ref[...] += jnp.sum(d, axis=0, keepdims=True)
    sq_ref[...] += jnp.sum(d * d, axis=0, keepdims=True)


def _conv_bn_act_kernel(p_ref, scale_ref, shift_ref, alpha_ref, w_ref, b_ref, y_ref):
    """y = PReLU(p * scale + shift) @ W + b  (final conv, no stats needed)."""
    z = p_ref[...].astype(jnp.float32) * scale_ref[...] + shift_ref[...]
    a = jnp.where(z >= 0, z, alpha_ref[...] * z)
    y_ref[...] = (jnp.dot(a.astype(w_ref.dtype), w_ref[...],
                          preferred_element_type=jnp.float32) + b_ref[...]).astype(y_ref.dtype)


# ---------------------------------------------------------------------------
# Tiling / layout helpers
# ---------------------------------------------------------------------------

def _round_up(x, m):
    return (x + m - 1) // m * m


def _cdiv(a, b):
    return -(-a // b)


def _vmem_limit_bytes():
    """Per-generation VMEM limit with headroom (v7x-safe fallback of 64 MiB physical)."""
    try:
        cap = int(pltpu.get_tpu_info().vmem_capacity_bytes)
    except Exception:
        cap = 64 * 1024 * 1024
    return min(int(cap * 0.75), 96 * 1024 * 1024)


def _pick_tm(m, row_bytes, fixed_bytes, budget_bytes, min_tiles=2):
    """Largest row tile whose pipelined footprint fits the VMEM budget, clamped so the grid keeps
    at least `min_tiles` row tiles (keeps both v7x TensorCores busy) and to a 2048-row cap."""
    avail = max(budget_bytes - fixed_bytes, 1 << 20)
    tm = avail // max(row_bytes, 1)
    tm = min(int(tm), 2048, max(_round_up(_cdiv(m, min_tiles), 16), 16))
    return max(16, (tm // 16) * 16)


def _grid_split(m, tm, want_split):
    """Split M into `want_split` parallel chunks of whole tiles (pads rows as needed)."""
    tiles_total = _cdiv(m, tm)
    split = want_split if (want_split > 1 and tiles_total >= want_split) else 1
    tiles = _cdiv(tiles_total, split)
    return split, tiles, split * tiles * tm


def _im2col_nhwc(img, k, stride, dilation, padding, pad_value, out_dtype):
    """(N,H,W,C) -> (N*Ho*Wo, k*k*C) patches with the RAW channel count.

    The spatial border is filled with the per-channel `pad_value` (the value the fused BN+PReLU
    maps to zero), so folding BN+PReLU into the conv kernel reproduces zero-padding of the
    activated tensor.  Column order: (ki, kj) major, channel minor.
    """
    n, h, w, c = img.shape
    if padding > 0:
        hp, wp = h + 2 * padding, w + 2 * padding
        canvas = jnp.broadcast_to(pad_value.astype(out_dtype).reshape(1, 1, 1, c),
                                  (n, hp, wp, c))
        ap = canvas.at[:, padding:padding + h, padding:padding + w, :].set(img.astype(out_dtype))
    else:
        ap = img.astype(out_dtype)
    ho = (h + 2 * padding - dilation * (k - 1) - 1) // stride + 1
    wo = (w + 2 * padding - dilation * (k - 1) - 1) // stride + 1
    cols = []
    for ki in range(k):
        for kj in range(k):
            i0, j0 = ki * dilation, kj * dilation
            cols.append(ap[:, i0:i0 + stride * (ho - 1) + 1:stride,
                              j0:j0 + stride * (wo - 1) + 1:stride, :])
    patches = jnp.concatenate(cols, axis=-1)
    return patches.reshape(n * ho * wo, k * k * c), ho, wo


def _conv_weight_matrix(w, groups, cout_p):
    """torch conv weight (Cout, Cin//g, kh, kw) -> (round_up(kh*kw*Cin, 128), cout_p) matmul weight.

    Rows ordered (ki, kj) major / raw input-channel minor (matches _im2col_nhwc); grouped convs
    are expanded block-diagonally; K-dim / Cout padding rows and columns are zero.
    """
    cout, in_pg, kh, kw = w.shape
    out_pg = cout // groups
    cin = in_pg * groups
    kdim = kh * kw * cin
    kdim_p = _round_up(kdim, 128)
    w = w.astype(jnp.float32)
    wm = jnp.zeros((kdim_p, cout_p), jnp.float32)
    for g in range(groups):
        blk = jnp.transpose(w[g * out_pg:(g + 1) * out_pg], (2, 3, 1, 0))  # (kh,kw,in_pg,out_pg)
        for ki in range(kh):
            for kj in range(kw):
                r0 = (ki * kw + kj) * cin + g * in_pg
                wm = wm.at[r0:r0 + in_pg, g * out_pg:(g + 1) * out_pg].set(blk[ki, kj])
    return wm


def _alpha_vec(alpha, c):
    a = jnp.asarray(alpha, jnp.float32).reshape(-1)
    if a.shape[0] == 1:
        a = jnp.broadcast_to(a, (c,))
    return a


def _tile_row(v, reps, width):
    """Per-channel vector -> (1, width) row tiled `reps` times (patch-column order), zero-padded."""
    row = jnp.tile(v.astype(jnp.float32), reps)
    return jnp.pad(row, (0, width - row.shape[0])).reshape(1, width)


# ---------------------------------------------------------------------------
# pallas_call wrappers
# ---------------------------------------------------------------------------

def _conv_bn_act_stats(p_p, scale_t, shift_t, alpha_t, wmat, b_row, out_dtype,
                       tm, split, vmem_limit):
    m_pad, kdim_p = p_p.shape
    cout_p = wmat.shape[1]
    tiles = m_pad // (split * tm)
    y, s, sq = pl.pallas_call(
        _conv_bn_act_stats_kernel,
        out_shape=(jax.ShapeDtypeStruct((m_pad, cout_p), out_dtype),
                   jax.ShapeDtypeStruct((split * 8, cout_p), jnp.float32),
                   jax.ShapeDtypeStruct((split * 8, cout_p), jnp.float32)),
        grid_spec=pltpu.PrefetchScalarGridSpec(
            num_scalar_prefetch=0,
            grid=(split, tiles),
            in_specs=[pl.BlockSpec((tm, kdim_p), lambda c, i: (c * tiles + i, 0)),
                      pl.BlockSpec((1, kdim_p), lambda c, i: (0, 0)),
                      pl.BlockSpec((1, kdim_p), lambda c, i: (0, 0)),
                      pl.BlockSpec((1, kdim_p), lambda c, i: (0, 0)),
                      pl.BlockSpec((kdim_p, cout_p), lambda c, i: (0, 0)),
                      pl.BlockSpec((1, cout_p), lambda c, i: (0, 0))],
            out_specs=[pl.BlockSpec((tm, cout_p), lambda c, i: (c * tiles + i, 0)),
                       pl.BlockSpec((8, cout_p), lambda c, i: (c, 0)),
                       pl.BlockSpec((8, cout_p), lambda c, i: (c, 0))],
        ),
        compiler_params=pltpu.CompilerParams(
            dimension_semantics=("parallel", "arbitrary"),
            vmem_limit_bytes=vmem_limit),
    )(p_p, scale_t, shift_t, alpha_t, wmat, b_row)
    s = jnp.sum(s.reshape(split, 8, cout_p)[:, 0, :], axis=0)
    sq = jnp.sum(sq.reshape(split, 8, cout_p)[:, 0, :], axis=0)
    return y, s, sq


def _conv_bn_act(p_p, scale_t, shift_t, alpha_t, wmat, b_row, tm, vmem_limit):
    m_pad, kdim_p = p_p.shape
    cout_p = wmat.shape[1]
    tiles = m_pad // tm
    return pl.pallas_call(
        _conv_bn_act_kernel,
        out_shape=jax.ShapeDtypeStruct((m_pad, cout_p), jnp.float32),
        grid_spec=pltpu.PrefetchScalarGridSpec(
            num_scalar_prefetch=0,
            grid=(tiles,),
            in_specs=[pl.BlockSpec((tm, kdim_p), lambda i: (i, 0)),
                      pl.BlockSpec((1, kdim_p), lambda i: (0, 0)),
                      pl.BlockSpec((1, kdim_p), lambda i: (0, 0)),
                      pl.BlockSpec((1, kdim_p), lambda i: (0, 0)),
                      pl.BlockSpec((kdim_p, cout_p), lambda i: (0, 0)),
                      pl.BlockSpec((1, cout_p), lambda i: (0, 0))],
            out_specs=pl.BlockSpec((tm, cout_p), lambda i: (i, 0)),
        ),
        compiler_params=pltpu.CompilerParams(
            dimension_semantics=("parallel",),
            vmem_limit_bytes=vmem_limit),
    )(p_p, scale_t, shift_t, alpha_t, wmat, b_row)


# ---------------------------------------------------------------------------
# DualConv forward
# ---------------------------------------------------------------------------

def dual_conv(x, params, *, kernel_size=3, stride=1, dilation=1, padding=1, groups=1,
              compute_dtype=jnp.bfloat16):
    """Forward of DualConv.  x: (N, Cin, H, W) float32 NCHW.  compute_dtype: MXU operand dtype."""
    n, cin, h, w = x.shape
    k = kernel_size
    pad2 = 1 if k == 3 else padding  # matches the torch module literally
    cout = params["conv1_w"].shape[0]
    cout_p = _round_up(cout, 128)
    op_bytes = jnp.dtype(compute_dtype).itemsize

    vmem_limit = _vmem_limit_bytes()
    budget = (vmem_limit * 4) // 5

    x = x.astype(jnp.float32)

    # ---- BN1 batch statistics: centered two-pass XLA reduction straight off NCHW ----
    mean1 = jnp.mean(x, axis=(0, 2, 3))
    var1 = jnp.mean(jnp.square(x - mean1[None, :, None, None]), axis=(0, 2, 3))
    gamma1 = params["bn1_gamma"].astype(jnp.float32)
    beta1 = params["bn1_beta"].astype(jnp.float32)
    scale1 = gamma1 * jax.lax.rsqrt(var1 + EPS)
    shift1 = beta1 - mean1 * scale1
    alpha1 = _alpha_vec(params["prelu1_alpha"], cin)
    # zero-padding of PReLU(BN1(x)) == padding x with -shift/scale (BN+PReLU maps it to 0)
    neutral1 = jnp.where(scale1 == 0, 0.0, -shift1 / jnp.where(scale1 == 0, 1.0, scale1))

    # ---- conv1: im2col on raw channels; BN1+PReLU+matmul+bias+BN2-stats fused in one kernel ----
    x_nhwc = jnp.transpose(x, (0, 2, 3, 1))  # NCHW interface -> NHWC for patch layout
    patches1, ho, wo = _im2col_nhwc(x_nhwc, k, stride, dilation, padding, neutral1, compute_dtype)
    m1 = n * ho * wo
    kdim1 = k * k * cin
    kdim1_p = _round_up(kdim1, 128)
    patches1 = jnp.pad(patches1, ((0, 0), (0, kdim1_p - kdim1)))

    wmat1 = _conv_weight_matrix(params["conv1_w"], groups, cout_p).astype(compute_dtype)
    b1 = jnp.pad(params["conv1_b"].astype(jnp.float32), (0, cout_p - cout))
    b1_row = b1.reshape(1, cout_p)
    scale1_t = _tile_row(scale1, k * k, kdim1_p)
    shift1_t = _tile_row(shift1, k * k, kdim1_p)
    alpha1_t = _tile_row(alpha1, k * k, kdim1_p)

    row_bytes1 = (2 * op_bytes + 8) * kdim1_p + (2 * op_bytes + 4) * cout_p
    fixed1 = 2 * op_bytes * kdim1_p * cout_p + 6 * 4 * kdim1_p + (2 * 2 * 8 + 2) * cout_p * 4
    tm1 = _pick_tm(m1, row_bytes1, fixed1, budget)
    split1, _, m1_pad = _grid_split(m1, tm1, 2)
    patches1_p = jnp.pad(patches1, ((0, m1_pad - m1), (0, 0)))

    y1, s1, sq1 = _conv_bn_act_stats(patches1_p, scale1_t, shift1_t, alpha1_t, wmat1, b1_row,
                                     compute_dtype, tm1, split1, vmem_limit)

    # Zero-padded patch rows see z = shift -> constant pre-bias row d0; remove their contribution
    # from the fused BN2 stats analytically (no per-tile masking in the kernel).
    n_pad1 = m1_pad - m1
    if n_pad1:
        a0 = jnp.where(shift1_t >= 0, shift1_t, alpha1_t * shift1_t)
        d0 = jnp.dot(a0.astype(compute_dtype), wmat1, preferred_element_type=jnp.float32)[0]
        s1 = s1 - n_pad1 * d0
        sq1 = sq1 - n_pad1 * d0 * d0
    mean2_full = s1 / m1 + b1                                   # stats were pre-bias; add it back
    var2_full = jnp.maximum(sq1 / m1 - jnp.square(s1 / m1), 0.0)

    gamma2 = params["bn2_gamma"].astype(jnp.float32)
    beta2 = params["bn2_beta"].astype(jnp.float32)
    scale2 = gamma2 * jax.lax.rsqrt(var2_full[:cout] + EPS)
    shift2 = beta2 - mean2_full[:cout] * scale2
    alpha2 = _alpha_vec(params["prelu2_alpha"], cout)
    neutral2 = jnp.where(scale2 == 0, 0.0, -shift2 / jnp.where(scale2 == 0, 1.0, scale2))

    # ---- conv2: patches from the raw-cout slice of y1; BN2+PReLU fused into the final kernel ----
    y1_img = y1[:m1, :cout].reshape(n, ho, wo, cout)
    patches2, ho2, wo2 = _im2col_nhwc(y1_img, k, 1, 1, pad2, neutral2, compute_dtype)
    m2 = n * ho2 * wo2
    kdim2 = k * k * cout
    kdim2_p = _round_up(kdim2, 128)
    patches2 = jnp.pad(patches2, ((0, 0), (0, kdim2_p - kdim2)))

    wmat2 = _conv_weight_matrix(params["conv2_w"], groups, cout_p).astype(compute_dtype)
    b2_row = jnp.pad(params["conv2_b"].astype(jnp.float32), (0, cout_p - cout)).reshape(1, cout_p)
    scale2_t = _tile_row(scale2, k * k, kdim2_p)
    shift2_t = _tile_row(shift2, k * k, kdim2_p)
    alpha2_t = _tile_row(alpha2, k * k, kdim2_p)

    row_bytes2 = (2 * op_bytes + 8) * kdim2_p + 3 * 4 * cout_p
    fixed2 = 2 * op_bytes * kdim2_p * cout_p + 6 * 4 * kdim2_p + 2 * cout_p * 4
    tm2 = _pick_tm(m2, row_bytes2, fixed2, budget)
    m2_pad = _cdiv(m2, tm2) * tm2
    patches2_p = jnp.pad(patches2, ((0, m2_pad - m2), (0, 0)))

    y2 = _conv_bn_act(patches2_p, scale2_t, shift2_t, alpha2_t, wmat2, b2_row, tm2, vmem_limit)

    out = y2[:m2, :cout].reshape(n, ho2, wo2, cout)
    return jnp.transpose(out, (0, 3, 1, 2))  # back to NCHW (module interface)


# ---------------------------------------------------------------------------
# Plain-JAX reference + test
# ---------------------------------------------------------------------------

def _reference(x, params, *, kernel_size, stride, dilation, padding, groups):
    def bn(v, gamma, beta):
        mean = jnp.mean(v, axis=(0, 2, 3), keepdims=True)
        var = jnp.mean((v - mean) ** 2, axis=(0, 2, 3), keepdims=True)
        return ((v - mean) * jax.lax.rsqrt(var + EPS) * gamma[None, :, None, None]
                + beta[None, :, None, None])

    def prelu(v, a):
        a = jnp.asarray(a, jnp.float32).reshape(-1)
        a = a.reshape(()) if a.shape[0] == 1 else a[None, :, None, None]
        return jnp.where(v >= 0, v, a * v)

    def conv(v, wgt, b, s, p, d, g):
        y = jax.lax.conv_general_dilated(
            v, wgt, window_strides=(s, s), padding=[(p, p), (p, p)],
            rhs_dilation=(d, d), dimension_numbers=("NCHW", "OIHW", "NCHW"),
            feature_group_count=g, precision=jax.lax.Precision.HIGHEST)
        return y + b[None, :, None, None]

    k = kernel_size
    pad2 = 1 if k == 3 else padding
    v = prelu(bn(x, params["bn1_gamma"], params["bn1_beta"]), params["prelu1_alpha"])
    v = conv(v, params["conv1_w"], params["conv1_b"], stride, padding, dilation, groups)
    v = prelu(bn(v, params["bn2_gamma"], params["bn2_beta"]), params["prelu2_alpha"])
    v = conv(v, params["conv2_w"], params["conv2_b"], 1, pad2, 1, groups)
    return v


if __name__ == "__main__":
    key = jax.random.PRNGKey(0)
    N, CIN, COUT, H, W = 2, 4, 8, 16, 16
    K, STRIDE, DIL, PAD, GROUPS = 3, 1, 1, 1, 2

    ks = jax.random.split(key, 9)
    x = jax.random.normal(ks[0], (N, CIN, H, W), jnp.float32)
    params = {
        "bn1_gamma": 1.0 + 0.1 * jax.random.normal(ks[1], (CIN,), jnp.float32),
        "bn1_beta": 0.1 * jax.random.normal(ks[2], (CIN,), jnp.float32),
        "prelu1_alpha": jnp.full((1,), 0.25, jnp.float32),
        "conv1_w": 0.1 * jax.random.normal(ks[3], (COUT, CIN // GROUPS, K, K), jnp.float32),
        "conv1_b": 0.1 * jax.random.normal(ks[4], (COUT,), jnp.float32),
        "bn2_gamma": 1.0 + 0.1 * jax.random.normal(ks[5], (COUT,), jnp.float32),
        "bn2_beta": 0.1 * jax.random.normal(ks[6], (COUT,), jnp.float32),
        "prelu2_alpha": jnp.full((1,), 0.25, jnp.float32),
        "conv2_w": 0.1 * jax.random.normal(ks[7], (COUT, COUT // GROUPS, K, K), jnp.float32),
        "conv2_b": 0.1 * jax.random.normal(ks[8], (COUT,), jnp.float32),
    }

    common = dict(kernel_size=K, stride=STRIDE, dilation=DIL, padding=PAD, groups=GROUPS)
    fwd_bf16 = jax.jit(functools.partial(dual_conv, **common))                       # perf path
    fwd_f32 = jax.jit(functools.partial(dual_conv, compute_dtype=jnp.float32, **common))

    out_bf16 = jax.block_until_ready(fwd_bf16(x, params))
    out_f32 = jax.block_until_ready(fwd_f32(x, params))
    ref = _reference(x, params, **common)

    ho = (H + 2 * PAD - DIL * (K - 1) - 1) // STRIDE + 1
    wo = (W + 2 * PAD - DIL * (K - 1) - 1) // STRIDE + 1
    assert out_bf16.shape == (N, COUT, ho, wo), out_bf16.shape
    assert out_f32.shape == (N, COUT, ho, wo), out_f32.shape

    # f32-operand path reproduces the reference tightly (guards the fused-kernel logic).
    err_f32 = float(jnp.max(jnp.abs(out_f32 - ref)))
    assert jnp.allclose(out_f32, ref, atol=5e-4, rtol=5e-4), err_f32

    # Default bf16-operand path (per perf review): tolerance reflects ~2^-9 MXU operand rounding
    # propagated through two convs and an intermediate BatchNorm.
    err_bf = float(jnp.max(jnp.abs(out_bf16 - ref)))
    rel_l2 = float(jnp.linalg.norm(out_bf16 - ref) / jnp.linalg.norm(ref))
    assert err_bf < 6e-2 and rel_l2 < 3e-2, (err_bf, rel_l2)

    print("KERNEL_OK")
</pallas_src>

<mosaic_0001>
module attributes {stable_mosaic.version = 11 : i64} {
  func.func @_conv_bn_act_stats_kernel(%arg0: i32, %arg1: i32, %arg2: memref<256x128xbf16, #tpu.memory_space<vmem>>, %arg3: memref<1x128xf32, #tpu.memory_space<vmem>>, %arg4: memref<1x128xf32, #tpu.memory_space<vmem>>, %arg5: memref<1x128xf32, #tpu.memory_space<vmem>>, %arg6: memref<128x128xbf16, #tpu.memory_space<vmem>>, %arg7: memref<1x128xf32, #tpu.memory_space<vmem>>, %arg8: memref<256x128xbf16, #tpu.memory_space<vmem>>, %arg9: memref<8x128xf32, #tpu.memory_space<vmem>>, %arg10: memref<8x128xf32, #tpu.memory_space<vmem>>) attributes {dimension_semantics = [#tpu.dimension_semantics<parallel>, #tpu.dimension_semantics<arbitrary>], iteration_bounds = array<i64: 2, 1>, scalar_prefetch = 0 : i64, scratch_operands = 0 : i64, tpu.core_type = #tpu.core_type<tc>, window_params = [{transform_indices = @transform_0, window_bounds = array<i64: 256, 128>}, {pipeline_mode = #tpu.pipeline_mode<synchronous>, transform_indices = @transform_1, window_bounds = array<i64: 1, 128>}, {pipeline_mode = #tpu.pipeline_mode<synchronous>, transform_indices = @transform_2, window_bounds = array<i64: 1, 128>}, {pipeline_mode = #tpu.pipeline_mode<synchronous>, transform_indices = @transform_3, window_bounds = array<i64: 1, 128>}, {pipeline_mode = #tpu.pipeline_mode<synchronous>, transform_indices = @transform_4, window_bounds = array<i64: 128, 128>}, {pipeline_mode = #tpu.pipeline_mode<synchronous>, transform_indices = @transform_5, window_bounds = array<i64: 1, 128>}, {transform_indices = @transform_6, window_bounds = array<i64: 256, 128>}, {transform_indices = @transform_7, window_bounds = array<i64: 8, 128>}, {transform_indices = @transform_8, window_bounds = array<i64: 8, 128>}]} {
    %c0_i32 = arith.constant 0 : i32
    %0 = arith.cmpi eq, %arg1, %c0_i32 : i32
    %1 = arith.extui %0 : i1 to i32
    %c0_i32_0 = arith.constant 0 : i32
    %2 = arith.cmpi ne, %1, %c0_i32_0 : i32
    scf.if %2 {
      %cst_25 = arith.constant 0.000000e+00 : f32
      %38 = vector.broadcast %cst_25 : f32 to vector<8x128xf32>
      %c0_26 = arith.constant 0 : index
      %c0_27 = arith.constant 0 : index
      %39 = vector.load %arg9[%c0_26, %c0_27] : memref<8x128xf32, #tpu.memory_space<vmem>>, vector<8x128xf32>
      tpu.vector_store %arg9[%c0_26, %c0_27], %38 {strides = array<i32>} : memref<8x128xf32, #tpu.memory_space<vmem>>, vector<8x128xf32>,
      %cst_28 = arith.constant 0.000000e+00 : f32
      %40 = vector.broadcast %cst_28 : f32 to vector<8x128xf32>
      %c0_29 = arith.constant 0 : index
      %c0_30 = arith.constant 0 : index
      %41 = vector.load %arg10[%c0_29, %c0_30] : memref<8x128xf32, #tpu.memory_space<vmem>>, vector<8x128xf32>
      tpu.vector_store %arg10[%c0_29, %c0_30], %40 {strides = array<i32>} : memref<8x128xf32, #tpu.memory_space<vmem>>, vector<8x128xf32>,
    } else {
    }
    %c0 = arith.constant 0 : index
    %c0_1 = arith.constant 0 : index
    %3 = vector.load %arg2[%c0, %c0_1] : memref<256x128xbf16, #tpu.memory_space<vmem>>, vector<256x128xbf16>
    %4 = arith.extf %3 : vector<256x128xbf16> to vector<256x128xf32>
    %c0_2 = arith.constant 0 : index
    %c0_3 = arith.constant 0 : index
    %5 = vector.load %arg3[%c0_2, %c0_3] : memref<1x128xf32, #tpu.memory_space<vmem>>, vector<1x128xf32>
    %6 = vector.broadcast %5 : vector<1x128xf32> to vector<256x128xf32>
    %7 = arith.mulf %4, %6 : vector<256x128xf32>
    %c0_4 = arith.constant 0 : index
    %c0_5 = arith.constant 0 : index
    %8 = vector.load %arg4[%c0_4, %c0_5] : memref<1x128xf32, #tpu.memory_space<vmem>>, vector<1x128xf32>
    %9 = vector.broadcast %8 : vector<1x128xf32> to vector<256x128xf32>
    %10 = arith.addf %7, %9 : vector<256x128xf32>
    %cst = arith.constant 0.000000e+00 : f32
    %11 = vector.broadcast %cst : f32 to vector<256x128xf32>
    %12 = arith.cmpf oge, %10, %11 : vector<256x128xf32>
    %c0_6 = arith.constant 0 : index
    %c0_7 = arith.constant 0 : index
    %13 = vector.load %arg5[%c0_6, %c0_7] : memref<1x128xf32, #tpu.memory_space<vmem>>, vector<1x128xf32>
    %14 = vector.broadcast %13 : vector<1x128xf32> to vector<256x128xf32>
    %15 = arith.mulf %14, %10 : vector<256x128xf32>
    %16 = arith.select %12, %10, %15 : vector<256x128xi1>, vector<256x128xf32>
    %17 = arith.truncf %16 : vector<256x128xf32> to vector<256x128xbf16>
    %c0_8 = arith.constant 0 : index
    %c0_9 = arith.constant 0 : index
    %18 = vector.load %arg6[%c0_8, %c0_9] : memref<128x128xbf16, #tpu.memory_space<vmem>>, vector<128x128xbf16>
    %cst_10 = arith.constant dense<0.000000e+00> : vector<256x128xf32>
    %19 = tpu.matmul %17, %18, %cst_10 {dimension_numbers = #tpu.dot_dimension_numbers<[1], [0], [0], [1], [0, 0, 1, 1], [], []>} : vector<256x128xbf16>, vector<128x128xbf16>, vector<256x128xf32> -> vector<256x128xf32>
    %c0_11 = arith.constant 0 : index
    %c0_12 = arith.constant 0 : index
    %20 = vector.load %arg7[%c0_11, %c0_12] : memref<1x128xf32, #tpu.memory_space<vmem>>, vector<1x128xf32>
    %21 = vector.broadcast %20 : vector<1x128xf32> to vector<256x128xf32>
    %22 = arith.addf %19, %21 : vector<256x128xf32>
    %23 = arith.truncf %22 : vector<256x128xf32> to vector<256x128xbf16>
    %c0_13 = arith.constant 0 : index
    %c0_14 = arith.constant 0 : index
    %24 = vector.load %arg8[%c0_13, %c0_14] : memref<256x128xbf16, #tpu.memory_space<vmem>>, vector<256x128xbf16>
    tpu.vector_store %arg8[%c0_13, %c0_14], %23 {strides = array<i32>} : memref<256x128xbf16, #tpu.memory_space<vmem>>, vector<256x128xbf16>,
    %c0_15 = arith.constant 0 : index
    %c0_16 = arith.constant 0 : index
    %25 = vector.load %arg9[%c0_15, %c0_16] : memref<8x128xf32, #tpu.memory_space<vmem>>, vector<8x128xf32>
    %cst_17 = arith.constant dense<0.000000e+00> : vector<128xf32>
    %26 = vector.multi_reduction <add>, %19, %cst_17 [0] : vector<256x128xf32> to vector<128xf32>
    %27 = vector.shape_cast %26 : vector<128xf32> to vector<1x128xf32>
    %28 = vector.broadcast %27 : vector<1x128xf32> to vector<8x128xf32>
    %29 = arith.addf %25, %28 : vector<8x128xf32>
    %c0_18 = arith.constant 0 : index
    %c0_19 = arith.constant 0 : index
    %30 = vector.load %arg9[%c0_18, %c0_19] : memref<8x128xf32, #tpu.memory_space<vmem>>, vector<8x128xf32>
    tpu.vector_store %arg9[%c0_18, %c0_19], %29 {strides = array<i32>} : memref<8x128xf32, #tpu.memory_space<vmem>>, vector<8x128xf32>,
    %c0_20 = arith.constant 0 : index
    %c0_21 = arith.constant 0 : index
    %31 = vector.load %arg10[%c0_20, %c0_21] : memref<8x128xf32, #tpu.memory_space<vmem>>, vector<8x128xf32>
    %32 = arith.mulf %19, %19 : vector<256x128xf32>
    %cst_22 = arith.constant dense<0.000000e+00> : vector<128xf32>
    %33 = vector.multi_reduction <add>, %32, %cst_22 [0] : vector<256x128xf32> to vector<128xf32>
    %34 = vector.shape_cast %33 : vector<128xf32> to vector<1x128xf32>
    %35 = vector.broadcast %34 : vector<1x128xf32> to vector<8x128xf32>
    %36 = arith.addf %31, %35 : vector<8x128xf32>
    %c0_23 = arith.constant 0 : index
    %c0_24 = arith.constant 0 : index
    %37 = vector.load %arg10[%c0_23, %c0_24] : memref<8x128xf32, #tpu.memory_space<vmem>>, vector<8x128xf32>
    tpu.vector_store %arg10[%c0_23, %c0_24], %36 {strides = array<i32>} : memref<8x128xf32, #tpu.memory_space<vmem>>, vector<8x128xf32>,
    return
  }
  func.func @transform_0(%arg0: i32, %arg1: i32) -> (i32, i32) {
    %c1_i32 = arith.constant 1 : i32
    %0 = arith.muli %arg0, %c1_i32 : i32
    %1 = arith.addi %0, %arg1 : i32
    %c0_i32 = arith.constant 0 : i32
    %c0_i32_0 = arith.constant 0 : i32
    return %1, %c0_i32 : i32, i32
  }
  func.func @transform_1(%arg0: i32, %arg1: i32) -> (i32, i32) {
    %c0_i32 = arith.constant 0 : i32
    %c0_i32_0 = arith.constant 0 : i32
    %c0_i32_1 = arith.constant 0 : i32
    return %c0_i32, %c0_i32_0 : i32, i32
  }
  func.func @transform_2(%arg0: i32, %arg1: i32) -> (i32, i32) {
    %c0_i32 = arith.constant 0 : i32
    %c0_i32_0 = arith.constant 0 : i32
    %c0_i32_1 = arith.constant 0 : i32
    return %c0_i32, %c0_i32_0 : i32, i32
  }
  func.func @transform_3(%arg0: i32, %arg1: i32) -> (i32, i32) {
    %c0_i32 = arith.constant 0 : i32
    %c0_i32_0 = arith.constant 0 : i32
    %c0_i32_1 = arith.constant 0 : i32
    return %c0_i32, %c0_i32_0 : i32, i32
  }
  func.func @transform_4(%arg0: i32, %arg1: i32) -> (i32, i32) {
    %c0_i32 = arith.constant 0 : i32
    %c0_i32_0 = arith.constant 0 : i32
    %c0_i32_1 = arith.constant 0 : i32
    return %c0_i32, %c0_i32_0 : i32, i32
  }
  func.func @transform_5(%arg0: i32, %arg1: i32) -> (i32, i32) {
    %c0_i32 = arith.constant 0 : i32
    %c0_i32_0 = arith.constant 0 : i32
    %c0_i32_1 = arith.constant 0 : i32
    return %c0_i32, %c0_i32_0 : i32, i32
  }
  func.func @transform_6(%arg0: i32, %arg1: i32) -> (i32, i32) {
    %c1_i32 = arith.constant 1 : i32
    %0 = arith.muli %arg0, %c1_i32 : i32
    %1 = arith.addi %0, %arg1 : i32
    %c0_i32 = arith.constant 0 : i32
    %c0_i32_0 = arith.constant 0 : i32
    return %1, %c0_i32 : i32, i32
  }
  func.func @transform_7(%arg0: i32, %arg1: i32) -> (i32, i32) {
    %c0_i32 = arith.constant 0 : i32
    %c0_i32_0 = arith.constant 0 : i32
    return %arg0, %c0_i32 : i32, i32
  }
  func.func @transform_8(%arg0: i32, %arg1: i32) -> (i32, i32) {
    %c0_i32 = arith.constant 0 : i32
    %c0_i32_0 = arith.constant 0 : i32
    return %arg0, %c0_i32 : i32, i32
  }
}

module attributes {stable_mosaic.version = 11 : i64} {
  func.func @_conv_bn_act_kernel(%arg0: i32, %arg1: memref<256x128xbf16, #tpu.memory_space<vmem>>, %arg2: memref<1x128xf32, #tpu.memory_space<vmem>>, %arg3: memref<1x128xf32, #tpu.memory_space<vmem>>, %arg4: memref<1x128xf32, #tpu.memory_space<vmem>>, %arg5: memref<128x128xbf16, #tpu.memory_space<vmem>>, %arg6: memref<1x128xf32, #tpu.memory_space<vmem>>, %arg7: memref<256x128xf32, #tpu.memory_space<vmem>>) attributes {dimension_semantics = [#tpu.dimension_semantics<parallel>], iteration_bounds = array<i64: 2>, scalar_prefetch = 0 : i64, scratch_operands = 0 : i64, tpu.core_type = #tpu.core_type<tc>, window_params = [{transform_indices = @transform_0, window_bounds = array<i64: 256, 128>}, {pipeline_mode = #tpu.pipeline_mode<synchronous>, transform_indices = @transform_1, window_bounds = array<i64: 1, 128>}, {pipeline_mode = #tpu.pipeline_mode<synchronous>, transform_indices = @transform_2, window_bounds = array<i64: 1, 128>}, {pipeline_mode = #tpu.pipeline_mode<synchronous>, transform_indices = @transform_3, window_bounds = array<i64: 1, 128>}, {pipeline_mode = #tpu.pipeline_mode<synchronous>, transform_indices = @transform_4, window_bounds = array<i64: 128, 128>}, {pipeline_mode = #tpu.pipeline_mode<synchronous>, transform_indices = @transform_5, window_bounds = array<i64: 1, 128>}, {transform_indices = @transform_6, window_bounds = array<i64: 256, 128>}]} {
    %c0 = arith.constant 0 : index
    %c0_0 = arith.constant 0 : index
    %0 = vector.load %arg1[%c0, %c0_0] : memref<256x128xbf16, #tpu.memory_space<vmem>>, vector<256x128xbf16>
    %1 = arith.extf %0 : vector<256x128xbf16> to vector<256x128xf32>
    %c0_1 = arith.constant 0 : index
    %c0_2 = arith.constant 0 : index
    %2 = vector.load %arg2[%c0_1, %c0_2] : memref<1x128xf32, #tpu.memory_space<vmem>>, vector<1x128xf32>
    %3 = vector.broadcast %2 : vector<1x128xf32> to vector<256x128xf32>
    %4 = arith.mulf %1, %3 : vector<256x128xf32>
    %c0_3 = arith.constant 0 : index
    %c0_4 = arith.constant 0 : index
    %5 = vector.load %arg3[%c0_3, %c0_4] : memref<1x128xf32, #tpu.memory_space<vmem>>, vector<1x128xf32>
    %6 = vector.broadcast %5 : vector<1x128xf32> to vector<256x128xf32>
    %7 = arith.addf %4, %6 : vector<256x128xf32>
    %cst = arith.constant 0.000000e+00 : f32
    %8 = vector.broadcast %cst : f32 to vector<256x128xf32>
    %9 = arith.cmpf oge, %7, %8 : vector<256x128xf32>
    %c0_5 = arith.constant 0 : index
    %c0_6 = arith.constant 0 : index
    %10 = vector.load %arg4[%c0_5, %c0_6] : memref<1x128xf32, #tpu.memory_space<vmem>>, vector<1x128xf32>
    %11 = vector.broadcast %10 : vector<1x128xf32> to vector<256x128xf32>
    %12 = arith.mulf %11, %7 : vector<256x128xf32>
    %13 = arith.select %9, %7, %12 : vector<256x128xi1>, vector<256x128xf32>
    %14 = arith.truncf %13 : vector<256x128xf32> to vector<256x128xbf16>
    %c0_7 = arith.constant 0 : index
    %c0_8 = arith.constant 0 : index
    %15 = vector.load %arg5[%c0_7, %c0_8] : memref<128x128xbf16, #tpu.memory_space<vmem>>, vector<128x128xbf16>
    %cst_9 = arith.constant dense<0.000000e+00> : vector<256x128xf32>
    %16 = tpu.matmul %14, %15, %cst_9 {dimension_numbers = #tpu.dot_dimension_numbers<[1], [0], [0], [1], [0, 0, 1, 1], [], []>} : vector<256x128xbf16>, vector<128x128xbf16>, vector<256x128xf32> -> vector<256x128xf32>
    %c0_10 = arith.constant 0 : index
    %c0_11 = arith.constant 0 : index
    %17 = vector.load %arg6[%c0_10, %c0_11] : memref<1x128xf32, #tpu.memory_space<vmem>>, vector<1x128xf32>
    %18 = vector.broadcast %17 : vector<1x128xf32> to vector<256x128xf32>
    %19 = arith.addf %16, %18 : vector<256x128xf32>
    %c0_12 = arith.constant 0 : index
    %c0_13 = arith.constant 0 : index
    %20 = vector.load %arg7[%c0_12, %c0_13] : memref<256x128xf32, #tpu.memory_space<vmem>>, vector<256x128xf32>
    tpu.vector_store %arg7[%c0_12, %c0_13], %19 {strides = array<i32>} : memref<256x128xf32, #tpu.memory_space<vmem>>, vector<256x128xf32>,
    return
  }
  func.func @transform_0(%arg0: i32) -> (i32, i32) {
    %c0_i32 = arith.constant 0 : i32
    %c0_i32_0 = arith.constant 0 : i32
    return %arg0, %c0_i32 : i32, i32
  }
  func.func @transform_1(%arg0: i32) -> (i32, i32) {
    %c0_i32 = arith.constant 0 : i32
    %c0_i32_0 = arith.constant 0 : i32
    %c0_i32_1 = arith.constant 0 : i32
    return %c0_i32, %c0_i32_0 : i32, i32
  }
  func.func @transform_2(%arg0: i32) -> (i32, i32) {
    %c0_i32 = arith.constant 0 : i32
    %c0_i32_0 = arith.constant 0 : i32
    %c0_i32_1 = arith.constant 0 : i32
    return %c0_i32, %c0_i32_0 : i32, i32
  }
  func.func @transform_3(%arg0: i32) -> (i32, i32) {
    %c0_i32 = arith.constant 0 : i32
    %c0_i32_0 = arith.constant 0 : i32
    %c0_i32_1 = arith.constant 0 : i32
    return %c0_i32, %c0_i32_0 : i32, i32
  }
  func.func @transform_4(%arg0: i32) -> (i32, i32) {
    %c0_i32 = arith.constant 0 : i32
    %c0_i32_0 = arith.constant 0 : i32
    %c0_i32_1 = arith.constant 0 : i32
    return %c0_i32, %c0_i32_0 : i32, i32
  }
  func.func @transform_5(%arg0: i32) -> (i32, i32) {
    %c0_i32 = arith.constant 0 : i32
    %c0_i32_0 = arith.constant 0 : i32
    %c0_i32_1 = arith.constant 0 : i32
    return %c0_i32, %c0_i32_0 : i32, i32
  }
  func.func @transform_6(%arg0: i32) -> (i32, i32) {
    %c0_i32 = arith.constant 0 : i32
    %c0_i32_0 = arith.constant 0 : i32
    return %arg0, %c0_i32 : i32, i32
  }
}

</mosaic_0001>

<llo_original>
// kernel: tile.33
$region0: #{tile.33}
  #allocation0 [shape = 's32[1]{0}', space=sflag, size = 0x4, scoped, tag = 'scoped memory for tile.33']
  %s0 = inlined_call_operand.vmem [shape: f32[4], index: 0, kind: input, shape index: {}]
  %s1 = inlined_call_operand.vmem [shape: f32[9,4], index: 1, kind: output, shape index: {}]
  // Predicated region
  $region2: #{tile.33} parent=0 // pred_check
    _
  $region3: #{tile.33} parent=0 // pred_check_branch
    %3 = sbr.rel (0) target = $region5
  $region4: #{tile.33} parent=0 // pred_region
    _
  $region5: #{tile.33} parent=0 // pred_fallthru
    _
  %v4 = vld [vmem:[%s0] ss:$0 sm:$0xff]
  %5 = vst [vmem:[%s1] sm:$0xff] %v4
  %s6 = scalar_lea.vmem %s1, 8
  %7 = vst [vmem:[%s6] sm:$0xff] %v4

// kernel: tile.34
$region0: #{tile.34}
  %s0 = inlined_call_operand.vmem [shape: f32[9,4], index: 0, kind: input, shape index: {}]
  %s1 = inlined_call_operand.vmem [shape: f32[36], index: 1, kind: output, shape index: {}]
  $region1: #{tile.34} parent=0
    #allocation0 [shape = 'u8[4096]{0}', space=vmem, size = 0x1000, scoped, tag = 'scoped mem for output reshape']
    %v2 = vld [vmem:[%s0] sm:$0x1]
    %vm3 = vcmask 31744
    %4 = vst.msk [vmem:[#allocation0] sm:$0x1] %vm3, %v2
    %s5 = scalar_lea.vmem %s0, 8
    %v6 = vld [vmem:[%s5] sm:$0x1]
    %7 = vrot.lane.b32.xlu0 %v6, 32
    %v8 = vpop.permute.xlu0 %7
    %vm9 = vcmask 294144
    %10 = vst.msk [vmem:[#allocation0] sm:$0x1] %vm9, %v8
    %s11 = scalar_lea.vmem %s0, 7
    %v12 = vld [vmem:[%s11] sm:$0x1]
    %13 = vrot.lane.b32.xlu0 %v12, 28
    %v14 = vpop.permute.xlu0 %13
    %vm15 = vcmask 261344
    %16 = vst.msk [vmem:[#allocation0] sm:$0x1] %vm15, %v14
    %s17 = scalar_lea.vmem %s0, 6
    %v18 = vld [vmem:[%s17] sm:$0x1]
    %19 = vrot.lane.b32.xlu0 %v18, 24
    %v20 = vpop.permute.xlu0 %19
    %vm21 = vcmask 228544
    %22 = vst.msk [vmem:[#allocation0] sm:$0x1] %vm21, %v20
    %s23 = scalar_lea.vmem %s0, 5
    %v24 = vld [vmem:[%s23] sm:$0x1]
    %25 = vrot.lane.b32.xlu0 %v24, 20
    %v26 = vpop.permute.xlu0 %25
    %vm27 = vcmask 195744
    %28 = vst.msk [vmem:[#allocation0] sm:$0x1] %vm27, %v26
    %s29 = scalar_lea.vmem %s0, 4
    %v30 = vld [vmem:[%s29] sm:$0x1]
    %31 = vrot.lane.b32.xlu0 %v30, 16
    %v32 = vpop.permute.xlu0 %31
    %vm33 = vcmask 162944
    %34 = vst.msk [vmem:[#allocation0] sm:$0x1] %vm33, %v32
    %s35 = scalar_lea.vmem %s0, 3
    %v36 = vld [vmem:[%s35] sm:$0x1]
    %37 = vrot.lane.b32.xlu0 %v36, 12
    %v38 = vpop.permute.xlu0 %37
    %vm39 = vcmask 130144
    %40 = vst.msk [vmem:[#allocation0] sm:$0x1] %vm39, %v38
    %s41 = scalar_lea.vmem %s0, 2
    %v42 = vld [vmem:[%s41] sm:$0x1]
    %43 = vrot.lane.b32.xlu0 %v42, 8
    %v44 = vpop.permute.xlu0 %43
    %vm45 = vcmask 97344
    %46 = vst.msk [vmem:[#allocation0] sm:$0x1] %vm45, %v44
    %s47 = scalar_lea.vmem %s0, 1
    %v48 = vld [vmem:[%s47] sm:$0x1]
    %49 = vrot.lane.b32.xlu0 %v48, 4
    %v50 = vpop.permute.xlu0 %49
    %vm51 = vcmask 64544
    %52 = vst.msk [vmem:[#allocation0] sm:$0x1] %vm51, %v50
    %s54 = ssub.s32 2, 1
    %v55 = vld [vmem:[#allocation0] sm:%s54]
    %s57 = ssub.s32 2, 1
    %58 = vst [vmem:[%s1] sm:%s57] %v55

// kernel: tile.48
$region0: #{tile.48}
  #allocation0 [shape = 's32[1]{0}', space=sflag, size = 0x4, scoped, tag = 'scoped memory for tile.48']
  %s0 = inlined_call_operand.vmem [shape: f32[8], index: 0, kind: input, shape index: {}]
  %s1 = inlined_call_operand.vmem [shape: f32[9,8], index: 1, kind: output, shape index: {}]
  // Predicated region
  $region2: #{tile.48} parent=0 // pred_check
    _
  $region3: #{tile.48} parent=0 // pred_check_branch
    %3 = sbr.rel (0) target = $region5
  $region4: #{tile.48} parent=0 // pred_region
    _
  $region5: #{tile.48} parent=0 // pred_fallthru
    _
  %v4 = vld [vmem:[%s0] ss:$0 sm:$0xff]
  %5 = vst [vmem:[%s1] sm:$0xff] %v4
  %s6 = scalar_lea.vmem %s1, 8
  %7 = vst [vmem:[%s6] sm:$0xff] %v4

// kernel: tile.49
$region0: #{tile.49}
  %s0 = inlined_call_operand.vmem [shape: f32[9,8], index: 0, kind: input, shape index: {}]
  %s1 = inlined_call_operand.vmem [shape: f32[72], index: 1, kind: output, shape index: {}]
  $region1: #{tile.49} parent=0
    #allocation0 [shape = 'u8[4096]{0}', space=vmem, size = 0x1000, scoped, tag = 'scoped mem for output reshape']
    %v2 = vld [vmem:[%s0] sm:$0x1]
    %vm3 = vcmask 64512
    %4 = vst.msk [vmem:[#allocation0] sm:$0x1] %vm3, %v2
    %s5 = scalar_lea.vmem %s0, 8
    %v6 = vld [vmem:[%s5] sm:$0x1]
    %7 = vrot.lane.b32.xlu0 %v6, 64
    %v8 = vpop.permute.xlu0 %7
    %vm9 = vcmask 589312
    %10 = vst.msk [vmem:[#allocation0] sm:$0x1] %vm9, %v8
    %s11 = scalar_lea.vmem %s0, 7
    %v12 = vld [vmem:[%s11] sm:$0x1]
    %13 = vrot.lane.b32.xlu0 %v12, 56
    %v14 = vpop.permute.xlu0 %13
    %vm15 = vcmask 523712
    %16 = vst.msk [vmem:[#allocation0] sm:$0x1] %vm15, %v14
    %s17 = scalar_lea.vmem %s0, 6
    %v18 = vld [vmem:[%s17] sm:$0x1]
    %19 = vrot.lane.b32.xlu0 %v18, 48
    %v20 = vpop.permute.xlu0 %19
    %vm21 = vcmask 458112
    %22 = vst.msk [vmem:[#allocation0] sm:$0x1] %vm21, %v20
    %s23 = scalar_lea.vmem %s0, 5
    %v24 = vld [vmem:[%s23] sm:$0x1]
    %25 = vrot.lane.b32.xlu0 %v24, 40
    %v26 = vpop.permute.xlu0 %25
    %vm27 = vcmask 392512
    %28 = vst.msk [vmem:[#allocation0] sm:$0x1] %vm27, %v26
    %s29 = scalar_lea.vmem %s0, 4
    %v30 = vld [vmem:[%s29] sm:$0x1]
    %31 = vrot.lane.b32.xlu0 %v30, 32
    %v32 = vpop.permute.xlu0 %31
    %vm33 = vcmask 326912
    %34 = vst.msk [vmem:[#allocation0] sm:$0x1] %vm33, %v32
    %s35 = scalar_lea.vmem %s0, 3
    %v36 = vld [vmem:[%s35] sm:$0x1]
    %37 = vrot.lane.b32.xlu0 %v36, 24
    %v38 = vpop.permute.xlu0 %37
    %vm39 = vcmask 261312
    %40 = vst.msk [vmem:[#allocation0] sm:$0x1] %vm39, %v38
    %s41 = scalar_lea.vmem %s0, 2
    %v42 = vld [vmem:[%s41] sm:$0x1]
    %43 = vrot.lane.b32.xlu0 %v42, 16
    %v44 = vpop.permute.xlu0 %43
    %vm45 = vcmask 195712
    %46 = vst.msk [vmem:[#allocation0] sm:$0x1] %vm45, %v44
    %s47 = scalar_lea.vmem %s0, 1
    %v48 = vld [vmem:[%s47] sm:$0x1]
    %49 = vrot.lane.b32.xlu0 %v48, 8
    %v50 = vpop.permute.xlu0 %49
    %vm51 = vcmask 130112
    %52 = vst.msk [vmem:[#allocation0] sm:$0x1] %vm51, %v50
    %s54 = ssub.s32 2, 1
    %v55 = vld [vmem:[#allocation0] sm:%s54]
    %s57 = ssub.s32 2, 1
    %58 = vst [vmem:[%s1] sm:%s57] %v55

// kernel: dual_conv.2
$region0: #{dual_conv.2}
  #allocation0 [shape = 'u32[]', space=smem, size = 0x4, offset = 0x4, fixed_abs, tag = 'smem constant byte address 0x4 - core index']
  #allocation1 [shape = 'u32[72,128]{1,0:T(1,128)}', space=vmem, size = 0x9000, scoped, tag = 'internal scratch']
  %s0 = inlined_call_operand.vmem [shape: bf16[512,128], index: 0, kind: input, shape index: {}]
  %s1 = inlined_call_operand.vmem [shape: f32[1,128], index: 1, kind: input, shape index: {}]
  %s2 = inlined_call_operand.vmem [shape: f32[1,128], index: 2, kind: input, shape index: {}]
  %s3 = inlined_call_operand.vmem [shape: f32[1,128], index: 3, kind: input, shape index: {}]
  %s4 = inlined_call_operand.vmem [shape: bf16[128,128], index: 4, kind: input, shape index: {}]
  %s5 = inlined_call_operand.vmem [shape: f32[1,128], index: 5, kind: input, shape index: {}]
  %s6 = inlined_call_operand.vmem [shape: bf16[512,128], index: 6, kind: output, shape index: {0}]
  %s7 = inlined_call_operand.vmem [shape: f32[16,128], index: 7, kind: output, shape index: {1}]
  %s8 = inlined_call_operand.vmem [shape: f32[16,128], index: 8, kind: output, shape index: {2}]
  %9 = xla_tuple %s6, %s7, %s8
  %s10 = sld [smem:[#allocation0]]
  $region77: #{dual_conv.2} parent=0
    _
  %s12 = ssub.s32 1, %s10
  %s13 = scalar_select 0, %s12, %s10
  loop: start=0, step=1, limit=4
  $region2: #{dual_conv.2} parent=0 // loop_pre_header
    _
  $region3: #{dual_conv.2} parent=0 // loop_header
    %s15 = sphi 0, %s19
    %p16 = scmp.ge.s32.totalorder %s15, 4
    %s22 = sphi 0, %s34
    %s23 = sphi 0, %s30
    %s24 = sphi 0, %s22
    %s25 = sphi 0, %s23
    %s26 = sphi 0, %s24
    %s27 = sphi 0, %s25
    %s39 = sphi 0, %s41
    %s42 = sphi 0, %s39
    %s43 = sphi 0, %s42
    %s59 = sphi 0, %s43
    %s63 = sphi 0, %s63
    %s65 = sphi 0, %s63
    %s66 = sphi 0, %s65
    %s80 = sphi 0, %s66
    %s84 = sphi 0, %s84
    %s86 = sphi 0, %s84
    %s87 = sphi 0, %s86
    %s101 = sphi 0, %s87
    %s105 = sphi 0, %s105
    %s107 = sphi 0, %s105
    %s108 = sphi 0, %s107
    %s122 = sphi 0, %s108
    %s126 = sphi 0, %s126
    %s128 = sphi 0, %s126
    %s129 = sphi 0, %s128
    %s143 = sphi 0, %s129
    %s147 = sphi 0, %s147
    %s149 = sphi 0, %s147
    %s150 = sphi 0, %s149
    %s164 = sphi 0, %s150
    %s172 = sphi 0, %s174
    %s175 = sphi 0, %s172
    %s176 = sphi 0, %s175
    %s192 = sphi 0, %s176
    %s198 = sphi 0, %s200
    %s201 = sphi 0, %s198
    %s202 = sphi 0, %s201
    %s218 = sphi 0, %s202
    %s224 = sphi 0, %s226
    %s227 = sphi 0, %s224
    %s228 = sphi 0, %s227
    %s244 = sphi 0, %s228
  $region4: #{dual_conv.2} parent=0 // loop_header_branch
    %18 = sbr.rel (%p16) target = $region8
  $region5: #{dual_conv.2} parent=0 // loop_body
    %s20 = ssub.s32 %s15, 1
    %s21 = ssub.s32 %s15, 2
    %s28 = sadd.s32 1, %s23
    %p29 = scmp.ge.s32.totalorder %s28, 1
    %s30 = scalar_select %p29, 0, %s28
    %s31 = sadd.s32 1, %s22
    %s32 = scalar_select %p29, %s31, %s22
    %p33 = scmp.ge.s32.totalorder %s32, 2
    %s34 = scalar_select %p33, 0, %s32
    %s35 = sadd.s32 %s22, %s23
    %s36 = sadd.s32 %s34, %s30
    %s37 = ssub.s32 %s35, %s36
    %p38 = scmp.eq.s32.totalorder %s37, 0
    %s40 = sadd.s32 %s39, 1
    %s41 = scalar_select %p38, %s39, %s40
    %p44 = pneg %p38
    %p45 = scmp.eq.s32.totalorder %s15, 1
    %p46 = por %p44, %p45
    %p47 = scmp.ne.s32.totalorder %s39, %s42
    %p48 = scmp.eq.s32.totalorder %s15, 0
    %p49 = por %p47, %p48
    %p50 = scmp.ne.s32.totalorder %s39, %s42
    %p51 = scmp.eq.s32.totalorder %s20, 1
    %p52 = por %p50, %p51
    %p53 = scmp.ne.s32.totalorder %s42, %s43
    %p54 = scmp.eq.s32.totalorder %s20, 0
    %p55 = por %p53, %p54
    %p56 = scmp.ne.s32.totalorder %s42, %s43
    %p57 = scmp.eq.s32.totalorder %s21, 1
    %p58 = por %p56, %p57
    %p60 = scmp.ne.s32.totalorder %s43, %s59
    %p61 = scmp.eq.s32.totalorder %s21, 0
    %p62 = por %p60, %p61
    %s64 = sadd.s32 %s63, 1
    %p67 = scmp.eq.s32.totalorder %s15, 1
    %p68 = scmp.ne.s32.totalorder %s63, %s65
    %p69 = scmp.eq.s32.totalorder %s15, 0
    %p70 = por %p68, %p69
    %p71 = scmp.ne.s32.totalorder %s63, %s65
    %p72 = scmp.eq.s32.totalorder %s20, 1
    %p73 = por %p71, %p72
    %p74 = scmp.ne.s32.totalorder %s65, %s66
    %p75 = scmp.eq.s32.totalorder %s20, 0
    %p76 = por %p74, %p75
    %p77 = scmp.ne.s32.totalorder %s65, %s66
    %p78 = scmp.eq.s32.totalorder %s21, 1
    %p79 = por %p77, %p78
    %p81 = scmp.ne.s32.totalorder %s66, %s80
    %p82 = scmp.eq.s32.totalorder %s21, 0
    %p83 = por %p81, %p82
    %s85 = sadd.s32 %s84, 1
    %p88 = scmp.eq.s32.totalorder %s15, 1
    %p89 = scmp.ne.s32.totalorder %s84, %s86
    %p90 = scmp.eq.s32.totalorder %s15, 0
    %p91 = por %p89, %p90
    %p92 = scmp.ne.s32.totalorder %s84, %s86
    %p93 = scmp.eq.s32.totalorder %s20, 1
    %p94 = por %p92, %p93
    %p95 = scmp.ne.s32.totalorder %s86, %s87
    %p96 = scmp.eq.s32.totalorder %s20, 0
    %p97 = por %p95, %p96
    %p98 = scmp.ne.s32.totalorder %s86, %s87
    %p99 = scmp.eq.s32.totalorder %s21, 1
    %p100 = por %p98, %p99
    %p102 = scmp.ne.s32.totalorder %s87, %s101
    %p103 = scmp.eq.s32.totalorder %s21, 0
    %p104 = por %p102, %p103
    %s106 = sadd.s32 %s105, 1
    %p109 = scmp.eq.s32.totalorder %s15, 1
    %p110 = scmp.ne.s32.totalorder %s105, %s107
    %p111 = scmp.eq.s32.totalorder %s15, 0
    %p112 = por %p110, %p111
    %p113 = scmp.ne.s32.totalorder %s105, %s107
    %p114 = scmp.eq.s32.totalorder %s20, 1
    %p115 = por %p113, %p114
    %p116 = scmp.ne.s32.totalorder %s107, %s108
    %p117 = scmp.eq.s32.totalorder %s20, 0
    %p118 = por %p116, %p117
    %p119 = scmp.ne.s32.totalorder %s107, %s108
    %p120 = scmp.eq.s32.totalorder %s21, 1
    %p121 = por %p119, %p120
    %p123 = scmp.ne.s32.totalorder %s108, %s122
    %p124 = scmp.eq.s32.totalorder %s21, 0
    %p125 = por %p123, %p124
    %s127 = sadd.s32 %s126, 1
    %p130 = scmp.eq.s32.totalorder %s15, 1
    %p131 = scmp.ne.s32.totalorder %s126, %s128
    %p132 = scmp.eq.s32.totalorder %s15, 0
    %p133 = por %p131, %p132
    %p134 = scmp.ne.s32.totalorder %s126, %s128
    %p135 = scmp.eq.s32.totalorder %s20, 1
    %p136 = por %p134, %p135
    %p137 = scmp.ne.s32.totalorder %s128, %s129
    %p138 = scmp.eq.s32.totalorder %s20, 0
    %p139 = por %p137, %p138
    %p140 = scmp.ne.s32.totalorder %s128, %s129
    %p141 = scmp.eq.s32.totalorder %s21, 1
    %p142 = por %p140, %p141
    %p144 = scmp.ne.s32.totalorder %s129, %s143
    %p145 = scmp.eq.s32.totalorder %s21, 0
    %p146 = por %p144, %p145
    %s148 = sadd.s32 %s147, 1
    %p151 = scmp.eq.s32.totalorder %s15, 1
    %p152 = scmp.ne.s32.totalorder %s147, %s149
    %p153 = scmp.eq.s32.totalorder %s15, 0
    %p154 = por %p152, %p153
    %p155 = scmp.ne.s32.totalorder %s147, %s149
    %p156 = scmp.eq.s32.totalorder %s20, 1
    %p157 = por %p155, %p156
    %p158 = scmp.ne.s32.totalorder %s149, %s150
    %p159 = scmp.eq.s32.totalorder %s20, 0
    %p160 = por %p158, %p159
    %p161 = scmp.ne.s32.totalorder %s149, %s150
    %p162 = scmp.eq.s32.totalorder %s21, 1
    %p163 = por %p161, %p162
    %p165 = scmp.ne.s32.totalorder %s150, %s164
    %p166 = scmp.eq.s32.totalorder %s21, 0
    %p167 = por %p165, %p166
    %s168 = sadd.s32 %s22, %s23
    %s169 = sadd.s32 %s34, %s30
    %s170 = ssub.s32 %s168, %s169
    %p171 = scmp.eq.s32.totalorder %s170, 0
    %s173 = sadd.s32 %s172, 1
    %s174 = scalar_select %p171, %s172, %s173
    %p177 = pneg %p171
    %p178 = scmp.eq.s32.totalorder %s15, 1
    %p179 = por %p177, %p178
    %p180 = scmp.ne.s32.totalorder %s172, %s175
    %p181 = scmp.eq.s32.totalorder %s15, 0
    %p182 = por %p180, %p181
    %p183 = scmp.ne.s32.totalorder %s172, %s175
    %p184 = scmp.eq.s32.totalorder %s20, 1
    %p185 = por %p183, %p184
    %p186 = scmp.ne.s32.totalorder %s175, %s176
    %p187 = scmp.eq.s32.totalorder %s20, 0
    %p188 = por %p186, %p187
    %p189 = scmp.ne.s32.totalorder %s175, %s176
    %p190 = scmp.eq.s32.totalorder %s21, 1
    %p191 = por %p189, %p190
    %p193 = scmp.ne.s32.totalorder %s176, %s192
    %p194 = scmp.eq.s32.totalorder %s21, 0
    %p195 = por %p193, %p194
    %s196 = ssub.s32 %s22, %s34
    %p197 = scmp.eq.s32.totalorder %s196, 0
    %s199 = sadd.s32 %s198, 1
    %s200 = scalar_select %p197, %s198, %s199
    %p203 = pneg %p197
    %p204 = scmp.eq.s32.totalorder %s15, 1
    %p205 = por %p203, %p204
    %p206 = scmp.ne.s32.totalorder %s198, %s201
    %p207 = scmp.eq.s32.totalorder %s15, 0
    %p208 = por %p206, %p207
    %p209 = scmp.ne.s32.totalorder %s198, %s201
    %p210 = scmp.eq.s32.totalorder %s20, 1
    %p211 = por %p209, %p210
    %p212 = scmp.ne.s32.totalorder %s201, %s202
    %p213 = scmp.eq.s32.totalorder %s20, 0
    %p214 = por %p212, %p213
    %p215 = scmp.ne.s32.totalorder %s201, %s202
    %p216 = scmp.eq.s32.totalorder %s21, 1
    %p217 = por %p215, %p216
    %p219 = scmp.ne.s32.totalorder %s202, %s218
    %p220 = scmp.eq.s32.totalorder %s21, 0
    %p221 = por %p219, %p220
    %s222 = ssub.s32 %s22, %s34
    %p223 = scmp.eq.s32.totalorder %s222, 0
    %s225 = sadd.s32 %s224, 1
    %s226 = scalar_select %p223, %s224, %s225
    %p229 = pneg %p223
    %p230 = scmp.eq.s32.totalorder %s15, 1
    %p231 = por %p229, %p230
    %p232 = scmp.ne.s32.totalorder %s224, %s227
    %p233 = scmp.eq.s32.totalorder %s15, 0
    %p234 = por %p232, %p233
    %p235 = scmp.ne.s32.totalorder %s224, %s227
    %p236 = scmp.eq.s32.totalorder %s20, 1
    %p237 = por %p235, %p236
    %p238 = scmp.ne.s32.totalorder %s227, %s228
    %p239 = scmp.eq.s32.totalorder %s20, 0
    %p240 = por %p238, %p239
    %p241 = scmp.ne.s32.totalorder %s227, %s228
    %p242 = scmp.eq.s32.totalorder %s21, 1
    %p243 = por %p241, %p242
    %p245 = scmp.ne.s32.totalorder %s228, %s244
    %p246 = scmp.eq.s32.totalorder %s21, 0
    %p247 = por %p245, %p246
    %p248 = scmp.le.s32.totalorder 1, %s15
    %p249 = scmp.lt.s32.totalorder %s15, 3
    %p250 = pnand %p248, %p249
    %p251 = pneg %p250
    // Predicated region
    $region9: #{dual_conv.2} parent=5 // pred_check
      _
    $region10: #{dual_conv.2} parent=5 // pred_check_branch
      %253 = sbr.rel (%p250) target = $region12
    $region11: #{dual_conv.2} parent=5 // pred_region
      %s254 = ssub.s32 %s15, 1
      // Predicated region
      $region13: #{dual_conv.2} parent=11 // pred_check
        %p255 = pneg %p76
      $region14: #{dual_conv.2} parent=11 // pred_check_branch
        %257 = sbr.rel (%p255) target = $region16
      $region15: #{dual_conv.2} parent=11 // pred_region
        _
      $region16: #{dual_conv.2} parent=11 // pred_fallthru
        _
      // Predicated region
      $region17: #{dual_conv.2} parent=11 // pred_check
        %p258 = pneg %p97
      $region18: #{dual_conv.2} parent=11 // pred_check_branch
        %260 = sbr.rel (%p258) target = $region20
      $region19: #{dual_conv.2} parent=11 // pred_region
        _
      $region20: #{dual_conv.2} parent=11 // pred_fallthru
        _
      // Predicated region
      $region21: #{dual_conv.2} parent=11 // pred_check
        %p261 = pneg %p118
      $region22: #{dual_conv.2} parent=11 // pred_check_branch
        %263 = sbr.rel (%p261) target = $region24
      $region23: #{dual_conv.2} parent=11 // pred_region
        _
      $region24: #{dual_conv.2} parent=11 // pred_fallthru
        _
      // Predicated region
      $region25: #{dual_conv.2} parent=11 // pred_check
        %p264 = pneg %p139
      $region26: #{dual_conv.2} parent=11 // pred_check_branch
        %266 = sbr.rel (%p264) target = $region28
      $region27: #{dual_conv.2} parent=11 // pred_region
        _
      $region28: #{dual_conv.2} parent=11 // pred_fallthru
        _
      // Predicated region
      $region29: #{dual_conv.2} parent=11 // pred_check
        %p267 = pneg %p160
      $region30: #{dual_conv.2} parent=11 // pred_check_branch
        %269 = sbr.rel (%p267) target = $region32
      $region31: #{dual_conv.2} parent=11 // pred_region
        _
      $region32: #{dual_conv.2} parent=11 // pred_fallthru
        _
    $region12: #{dual_conv.2} parent=5 // pred_fallthru
      _
    %p270 = scmp.lt.s32.totalorder %s15, 2
    // Predicated region
    $region33: #{dual_conv.2} parent=5 // pred_check
      %p271 = pneg %p270
    $region34: #{dual_conv.2} parent=5 // pred_check_branch
      %273 = sbr.rel (%p271) target = $region36
    $region35: #{dual_conv.2} parent=5 // pred_region
      // Predicated region
      $region37: #{dual_conv.2} parent=35 // pred_check
        %p274 = pneg %p49
      $region38: #{dual_conv.2} parent=35 // pred_check_branch
        %276 = sbr.rel (%p274) target = $region40
      $region39: #{dual_conv.2} parent=35 // pred_region
        %s277 = sadd.s32 %s22, %s23
        %s278 = smul.u32 32, %s277
        %p279 = scmp.lt.s32.totalorder %s278, 63
        %s280 = scalar_select %p279, %s278, 63
        %s281 = smul.addr %s280, 4
        %s282 = scalar_lea.vmem %s0, %s281
        %s283 = sadd.s32 %s22, %s23
        %s284 = smul.u32 32, %s283
      $region40: #{dual_conv.2} parent=35 // pred_fallthru
        _
    $region36: #{dual_conv.2} parent=5 // pred_fallthru
      _
    %p285 = scmp.le.s32.totalorder 1, %s15
    %p286 = scmp.lt.s32.totalorder %s15, 3
    %p287 = pnand %p285, %p286
    %p288 = pneg %p287
    // Predicated region
    $region41: #{dual_conv.2} parent=5 // pred_check
      _
    $region42: #{dual_conv.2} parent=5 // pred_check_branch
      %290 = sbr.rel (%p287) target = $region44
    $region43: #{dual_conv.2} parent=5 // pred_region
      %s291 = ssub.s32 %s15, 1
      %s292 = sadd.s32 %s24, %s25
      %s293 = smul.u32 32, %s292
      %p294 = scmp.lt.s32.totalorder %s293, 63
      %s295 = scalar_select %p294, %s293, 63
      %s296 = smul.addr %s295, 4
      %s297 = scalar_lea.vmem %s0, %s296
      %p298 = pneg %p55
      %p299 = pneg %p52
      %p300 = pneg %p76
      %p301 = pneg %p73
      %p302 = pneg %p97
      %p303 = pneg %p94
      %p304 = pneg %p118
      %p305 = pneg %p115
      %p306 = pneg %p139
      %p307 = pneg %p136
      %p308 = pneg %p160
      %p309 = pneg %p157
      %p310 = pneg %p188
      %p311 = pneg %p185
      %s312 = sadd.s32 %s24, %s25
      %s313 = smul.u32 32, %s312
      %p314 = scmp.lt.s32.totalorder %s313, 63
      %s315 = scalar_select %p314, %s313, 63
      %s316 = smul.addr %s315, 4
      %s317 = scalar_lea.vmem %s6, %s316
      %p318 = pneg %p214
      %p319 = pneg %p211
      %p320 = scmp.lt.s32.totalorder %s24, 1
      %s321 = scalar_select %p320, %s24, 1
      %s322 = smul.addr %s321, 8
      %s323 = scalar_lea.vmem %s7, %s322
      %p324 = pneg %p240
      %p325 = pneg %p237
      %p326 = scmp.lt.s32.totalorder %s24, 1
      %s327 = scalar_select %p326, %s24, 1
      %s328 = smul.addr %s327, 8
      %s329 = scalar_lea.vmem %s8, %s328
      %s330 = sadd.s32 %s24, %s25
      %s331 = smul.u32 32, %s330
      %p332 = scmp.lt.s32.totalorder %s331, 63
      %s333 = scalar_select %p332, %s331, 63
      %s334 = smul.addr %s333, 4
      %s335 = scalar_lea.vmem %s0, %s334
      %s336 = sadd.s32 %s24, %s25
      %s337 = smul.u32 32, %s336
      %s338 = sadd.s32 %s24, %s25
      %s339 = smul.u32 32, %s338
      %p340 = scmp.lt.s32.totalorder %s339, 63
      %s341 = scalar_select %p340, %s339, 63
      %s342 = smul.addr %s341, 4
      %s343 = scalar_lea.vmem %s6, %s342
      %s344 = sadd.s32 %s24, %s25
      %s345 = smul.u32 32, %s344
      %p346 = scmp.lt.s32.totalorder %s24, 1
      %s347 = scalar_select %p346, %s24, 1
      %s348 = smul.addr %s347, 8
      %s349 = scalar_lea.vmem %s7, %s348
      %p350 = scmp.lt.s32.totalorder %s24, 1
      %s351 = scalar_select %p350, %s24, 1
      %s352 = smul.addr %s351, 8
      %s353 = scalar_lea.vmem %s8, %s352
      %p354 = scmp.eq.s32.totalorder %s25, 0
      // Predicated region
      $region45: #{dual_conv.2} parent=43 // pred_check
        %p355 = pneg %p354
      $region46: #{dual_conv.2} parent=43 // pred_check_branch
        %357 = sbr.rel (%p355) target = $region48
      $region47: #{dual_conv.2} parent=43 // pred_region
        %358 = vst [vmem:[%s349] sm:$0xff] 0.0
        %359 = vst [vmem:[%s353] sm:$0xff] 0.0
      $region48: #{dual_conv.2} parent=43 // pred_fallthru
        _
      %v360 = vld [vmem:[%s335] sm:$0xf]
      %v361 = vld [vmem:[%s335 + $0x4] sm:$0xf]
      %v362 = vld [vmem:[%s335 + $0x8] sm:$0xf]
      %v363 = vld [vmem:[%s335 + $0xc] sm:$0xf]
      %v364 = vld [vmem:[%s335 + $0x10] sm:$0xf]
      %v365 = vld [vmem:[%s335 + $0x14] sm:$0xf]
      %v366 = vld [vmem:[%s335 + $0x18] sm:$0xf]
      %v367 = vld [vmem:[%s335 + $0x1c] sm:$0xf]
      %v368 = vld [vmem:[%s335 + $0x20] sm:$0xf]
      %v369 = vld [vmem:[%s335 + $0x24] sm:$0xf]
      %v370 = vld [vmem:[%s335 + $0x28] sm:$0xf]
      %v371 = vld [vmem:[%s335 + $0x2c] sm:$0xf]
      %v372 = vld [vmem:[%s335 + $0x30] sm:$0xf]
      %v373 = vld [vmem:[%s335 + $0x34] sm:$0xf]
      %v374 = vld [vmem:[%s335 + $0x38] sm:$0xf]
      %v375 = vld [vmem:[%s335 + $0x3c] sm:$0xf]
      %v376 = vld [vmem:[%s335 + $0x40] sm:$0xf]
      %v377 = vld [vmem:[%s335 + $0x44] sm:$0xf]
      %v378 = vld [vmem:[%s335 + $0x48] sm:$0xf]
      %v379 = vld [vmem:[%s335 + $0x4c] sm:$0xf]
      %v380 = vld [vmem:[%s335 + $0x50] sm:$0xf]
      %v381 = vld [vmem:[%s335 + $0x54] sm:$0xf]
      %v382 = vld [vmem:[%s335 + $0x58] sm:$0xf]
      %v383 = vld [vmem:[%s335 + $0x5c] sm:$0xf]
      %v384 = vld [vmem:[%s335 + $0x60] sm:$0xf]
      %v385 = vld [vmem:[%s335 + $0x64] sm:$0xf]
      %v386 = vld [vmem:[%s335 + $0x68] sm:$0xf]
      %v387 = vld [vmem:[%s335 + $0x6c] sm:$0xf]
      %v388 = vld [vmem:[%s335 + $0x70] sm:$0xf]
      %v389 = vld [vmem:[%s335 + $0x74] sm:$0xf]
      %v390 = vld [vmem:[%s335 + $0x78] sm:$0xf]
      %v391 = vld [vmem:[%s335 + $0x7c] sm:$0xf]
      %v392 = vunpack.c.l.bf16 %v360
      %v393 = vunpack.c.l.bf16 %v361
      %v394 = vunpack.c.l.bf16 %v362
      %v395 = vunpack.c.l.bf16 %v363
      %v396 = vunpack.c.l.bf16 %v364
      %v397 = vunpack.c.l.bf16 %v365
      %v398 = vunpack.c.l.bf16 %v366
      %v399 = vunpack.c.l.bf16 %v367
      %v400 = vunpack.c.l.bf16 %v368
      %v401 = vunpack.c.l.bf16 %v369
      %v402 = vunpack.c.l.bf16 %v370
      %v403 = vunpack.c.l.bf16 %v371
      %v404 = vunpack.c.l.bf16 %v372
      %v405 = vunpack.c.l.bf16 %v373
      %v406 = vunpack.c.l.bf16 %v374
      %v407 = vunpack.c.l.bf16 %v375
      %v408 = vunpack.c.l.bf16 %v376
      %v409 = vunpack.c.l.bf16 %v377
      %v410 = vunpack.c.l.bf16 %v378
      %v411 = vunpack.c.l.bf16 %v379
      %v412 = vunpack.c.l.bf16 %v380
      %v413 = vunpack.c.l.bf16 %v381
      %v414 = vunpack.c.l.bf16 %v382
      %v415 = vunpack.c.l.bf16 %v383
      %v416 = vunpack.c.l.bf16 %v384
      %v417 = vunpack.c.l.bf16 %v385
      %v418 = vunpack.c.l.bf16 %v386
      %v419 = vunpack.c.l.bf16 %v387
      %v420 = vunpack.c.l.bf16 %v388
      %v421 = vunpack.c.l.bf16 %v389
      %v422 = vunpack.c.l.bf16 %v390
      %v423 = vunpack.c.l.bf16 %v391
      %v424 = vld [vmem:[%s1] sm:$0x1]
      %v426 = vperm.slane %v424, 0
      %v428 = vmul.f32 %v392, %v426
      %v429 = vmul.f32 %v393, %v426
      %v430 = vmul.f32 %v394, %v426
      %v431 = vmul.f32 %v395, %v426
      %v432 = vmul.f32 %v396, %v426
      %v433 = vmul.f32 %v397, %v426
      %v434 = vmul.f32 %v398, %v426
      %v435 = vmul.f32 %v399, %v426
      %v436 = vmul.f32 %v400, %v426
      %v437 = vmul.f32 %v401, %v426
      %v438 = vmul.f32 %v402, %v426
      %v439 = vmul.f32 %v403, %v426
      %v440 = vmul.f32 %v404, %v426
      %v441 = vmul.f32 %v405, %v426
      %v442 = vmul.f32 %v406, %v426
      %v443 = vmul.f32 %v407, %v426
      %v444 = vmul.f32 %v408, %v426
      %v445 = vmul.f32 %v409, %v426
      %v446 = vmul.f32 %v410, %v426
      %v447 = vmul.f32 %v411, %v426
      %v448 = vmul.f32 %v412, %v426
      %v449 = vmul.f32 %v413, %v426
      %v450 = vmul.f32 %v414, %v426
      %v451 = vmul.f32 %v415, %v426
      %v452 = vmul.f32 %v416, %v426
      %v453 = vmul.f32 %v417, %v426
      %v454 = vmul.f32 %v418, %v426
      %v455 = vmul.f32 %v419, %v426
      %v456 = vmul.f32 %v420, %v426
      %v457 = vmul.f32 %v421, %v426
      %v458 = vmul.f32 %v422, %v426
      %v459 = vmul.f32 %v423, %v426
      %v460 = vld [vmem:[%s2] sm:$0x1]
      %v462 = vperm.slane %v460, 0
      %v464 = vadd.f32 %v428, %v462
      %v465 = vadd.f32 %v429, %v462
      %v466 = vadd.f32 %v430, %v462
      %v467 = vadd.f32 %v431, %v462
      %v468 = vadd.f32 %v432, %v462
      %v469 = vadd.f32 %v433, %v462
      %v470 = vadd.f32 %v434, %v462
      %v471 = vadd.f32 %v435, %v462
      %v472 = vadd.f32 %v436, %v462
      %v473 = vadd.f32 %v437, %v462
      %v474 = vadd.f32 %v438, %v462
      %v475 = vadd.f32 %v439, %v462
      %v476 = vadd.f32 %v440, %v462
      %v477 = vadd.f32 %v441, %v462
      %v478 = vadd.f32 %v442, %v462
      %v479 = vadd.f32 %v443, %v462
      %v480 = vadd.f32 %v444, %v462
      %v481 = vadd.f32 %v445, %v462
      %v482 = vadd.f32 %v446, %v462
      %v483 = vadd.f32 %v447, %v462
      %v484 = vadd.f32 %v448, %v462
      %v485 = vadd.f32 %v449, %v462
      %v486 = vadd.f32 %v450, %v462
      %v487 = vadd.f32 %v451, %v462
      %v488 = vadd.f32 %v452, %v462
      %v489 = vadd.f32 %v453, %v462
      %v490 = vadd.f32 %v454, %v462
      %v491 = vadd.f32 %v455, %v462
      %v492 = vadd.f32 %v456, %v462
      %v493 = vadd.f32 %v457, %v462
      %v494 = vadd.f32 %v458, %v462
      %v495 = vadd.f32 %v459, %v462
      %vm496 = vcmp.ge.f32.partialorder %v464, 0.0
      %vm497 = vcmp.ge.f32.partialorder %v465, 0.0
      %vm498 = vcmp.ge.f32.partialorder %v466, 0.0
      %vm499 = vcmp.ge.f32.partialorder %v467, 0.0
      %vm500 = vcmp.ge.f32.partialorder %v468, 0.0
      %vm501 = vcmp.ge.f32.partialorder %v469, 0.0
      %vm502 = vcmp.ge.f32.partialorder %v470, 0.0
      %vm503 = vcmp.ge.f32.partialorder %v471, 0.0
      %vm504 = vcmp.ge.f32.partialorder %v472, 0.0
      %vm505 = vcmp.ge.f32.partialorder %v473, 0.0
      %vm506 = vcmp.ge.f32.partialorder %v474, 0.0
      %vm507 = vcmp.ge.f32.partialorder %v475, 0.0
      %vm508 = vcmp.ge.f32.partialorder %v476, 0.0
      %vm509 = vcmp.ge.f32.partialorder %v477, 0.0
      %vm510 = vcmp.ge.f32.partialorder %v478, 0.0
      %vm511 = vcmp.ge.f32.partialorder %v479, 0.0
      %vm512 = vcmp.ge.f32.partialorder %v480, 0.0
      %vm513 = vcmp.ge.f32.partialorder %v481, 0.0
      %vm514 = vcmp.ge.f32.partialorder %v482, 0.0
      %vm515 = vcmp.ge.f32.partialorder %v483, 0.0
      %vm516 = vcmp.ge.f32.partialorder %v484, 0.0
      %vm517 = vcmp.ge.f32.partialorder %v485, 0.0
      %vm518 = vcmp.ge.f32.partialorder %v486, 0.0
      %vm519 = vcmp.ge.f32.partialorder %v487, 0.0
      %vm520 = vcmp.ge.f32.partialorder %v488, 0.0
      %vm521 = vcmp.ge.f32.partialorder %v489, 0.0
      %vm522 = vcmp.ge.f32.partialorder %v490, 0.0
      %vm523 = vcmp.ge.f32.partialorder %v491, 0.0
      %vm524 = vcmp.ge.f32.partialorder %v492, 0.0
      %vm525 = vcmp.ge.f32.partialorder %v493, 0.0
      %vm526 = vcmp.ge.f32.partialorder %v494, 0.0
      %vm527 = vcmp.ge.f32.partialorder %v495, 0.0
      %v528 = vld [vmem:[%s3] sm:$0x1]
      %v530 = vperm.slane %v528, 0
      %v532 = vmul.f32 %v530, %v464
      %v533 = vmul.f32 %v530, %v465
      %v534 = vmul.f32 %v530, %v466
      %v535 = vmul.f32 %v530, %v467
      %v536 = vmul.f32 %v530, %v468
      %v537 = vmul.f32 %v530, %v469
      %v538 = vmul.f32 %v530, %v470
      %v539 = vmul.f32 %v530, %v471
      %v540 = vmul.f32 %v530, %v472
      %v541 = vmul.f32 %v530, %v473
      %v542 = vmul.f32 %v530, %v474
      %v543 = vmul.f32 %v530, %v475
      %v544 = vmul.f32 %v530, %v476
      %v545 = vmul.f32 %v530, %v477
      %v546 = vmul.f32 %v530, %v478
      %v547 = vmul.f32 %v530, %v479
      %v548 = vmul.f32 %v530, %v480
      %v549 = vmul.f32 %v530, %v481
      %v550 = vmul.f32 %v530, %v482
      %v551 = vmul.f32 %v530, %v483
      %v552 = vmul.f32 %v530, %v484
      %v553 = vmul.f32 %v530, %v485
      %v554 = vmul.f32 %v530, %v486
      %v555 = vmul.f32 %v530, %v487
      %v556 = vmul.f32 %v530, %v488
      %v557 = vmul.f32 %v530, %v489
      %v558 = vmul.f32 %v530, %v490
      %v559 = vmul.f32 %v530, %v491
      %v560 = vmul.f32 %v530, %v492
      %v561 = vmul.f32 %v530, %v493
      %v562 = vmul.f32 %v530, %v494
      %v563 = vmul.f32 %v530, %v495
      %v564 = vsel %vm496, %v464, %v532
      %v565 = vsel %vm497, %v465, %v533
      %v566 = vsel %vm498, %v466, %v534
      %v567 = vsel %vm499, %v467, %v535
      %v568 = vsel %vm500, %v468, %v536
      %v569 = vsel %vm501, %v469, %v537
      %v570 = vsel %vm502, %v470, %v538
      %v571 = vsel %vm503, %v471, %v539
      %v572 = vsel %vm504, %v472, %v540
      %v573 = vsel %vm505, %v473, %v541
      %v574 = vsel %vm506, %v474, %v542
      %v575 = vsel %vm507, %v475, %v543
      %v576 = vsel %vm508, %v476, %v544
      %v577 = vsel %vm509, %v477, %v545
      %v578 = vsel %vm510, %v478, %v546
      %v579 = vsel %vm511, %v479, %v547
      %v580 = vsel %vm512, %v480, %v548
      %v581 = vsel %vm513, %v481, %v549
      %v582 = vsel %vm514, %v482, %v550
      %v583 = vsel %vm515, %v483, %v551
      %v584 = vsel %vm516, %v484, %v552
      %v585 = vsel %vm517, %v485, %v553
      %v586 = vsel %vm518, %v486, %v554
      %v587 = vsel %vm519, %v487, %v555
      %v588 = vsel %vm520, %v488, %v556
      %v589 = vsel %vm521, %v489, %v557
      %v590 = vsel %vm522, %v490, %v558
      %v591 = vsel %vm523, %v491, %v559
      %v592 = vsel %vm524, %v492, %v560
      %v593 = vsel %vm525, %v493, %v561
      %v594 = vsel %vm526, %v494, %v562
      %v595 = vsel %vm527, %v495, %v563
      %v596 = vpack.c.bf16 %v565, %v564
      %v597 = vpack.c.bf16 %v567, %v566
      %v598 = vpack.c.bf16 %v569, %v568
      %v599 = vpack.c.bf16 %v571, %v570
      %v600 = vpack.c.bf16 %v573, %v572
      %v601 = vpack.c.bf16 %v575, %v574
      %v602 = vpack.c.bf16 %v577, %v576
      %v603 = vpack.c.bf16 %v579, %v578
      %v604 = vpack.c.bf16 %v581, %v580
      %v605 = vpack.c.bf16 %v583, %v582
      %v606 = vpack.c.bf16 %v585, %v584
      %v607 = vpack.c.bf16 %v587, %v586
      %v608 = vpack.c.bf16 %v589, %v588
      %v609 = vpack.c.bf16 %v591, %v590
      %v610 = vpack.c.bf16 %v593, %v592
      %v611 = vpack.c.bf16 %v595, %v594
      %v612 = vld [vmem:[%s4] sm:$0xf]
      %v613 = vld [vmem:[%s4 + $0x4] sm:$0xf]
      %v614 = vld [vmem:[%s4 + $0x8] sm:$0xf]
      %v615 = vld [vmem:[%s4 + $0xc] sm:$0xf]
      %v616 = vld [vmem:[%s4 + $0x10] sm:$0xf]
      %v617 = vld [vmem:[%s4 + $0x14] sm:$0xf]
      %v618 = vld [vmem:[%s4 + $0x18] sm:$0xf]
      %v619 = vld [vmem:[%s4 + $0x1c] sm:$0xf]
      %v620 = vld [vmem:[%s4 + $0x20] sm:$0xf]
      %v621 = vld [vmem:[%s4 + $0x24] sm:$0xf]
      %v622 = vld [vmem:[%s4 + $0x28] sm:$0xf]
      %v623 = vld [vmem:[%s4 + $0x2c] sm:$0xf]
      %v624 = vld [vmem:[%s4 + $0x30] sm:$0xf]
      %v625 = vld [vmem:[%s4 + $0x34] sm:$0xf]
      %v626 = vld [vmem:[%s4 + $0x38] sm:$0xf]
      %v627 = vld [vmem:[%s4 + $0x3c] sm:$0xf]
      %v644 = vunpack.c.l.b16 %v612
      %v645 = vunpack.c.l.b16 %v613
      %v646 = vunpack.c.l.b16 %v614
      %v647 = vunpack.c.l.b16 %v615
      %v648 = vunpack.c.l.b16 %v616
      %v649 = vunpack.c.l.b16 %v617
      %v650 = vunpack.c.l.b16 %v618
      %v651 = vunpack.c.l.b16 %v619
      %v652 = vunpack.c.l.b16 %v620
      %v653 = vunpack.c.l.b16 %v621
      %v654 = vunpack.c.l.b16 %v622
      %v655 = vunpack.c.l.b16 %v623
      %v656 = vunpack.c.l.b16 %v624
      %v657 = vunpack.c.l.b16 %v625
      %v658 = vunpack.c.l.b16 %v626
      %v659 = vunpack.c.l.b16 %v627
      %v660 = vpack.c.b16 %v645, %v644
      %v661 = vpack.c.b16 %v647, %v646
      %v662 = vpack.c.b16 %v649, %v648
      %v663 = vpack.c.b16 %v651, %v650
      %v664 = vpack.c.b16 %v653, %v652
      %v665 = vpack.c.b16 %v655, %v654
      %v666 = vpack.c.b16 %v657, %v656
      %v667 = vpack.c.b16 %v659, %v658
      %676 = vmatpush.bf16.msra.mxu0 %v667
      %677 = vmatpush.bf16.msra.mxu0 %v666
      %678 = vmatpush.bf16.msra.mxu0 %v665
      %679 = vmatpush.bf16.msra.mxu0 %v664
      %680 = vmatpush.bf16.msra.mxu0 %v663
      %681 = vmatpush.bf16.msra.mxu0 %v662
      %682 = vmatpush.bf16.msra.mxu0 %v661
      %683 = vmatpush.bf16.msra.mxu0 %v660
      %684 = vmatmul.bf16.gmra.mxu0 %v596
      %v685 = vpop.f32.mrf.mxu0
      %v686 = vadd.f32 0.0, %v685
      %v687 = vpop.f32.mrf.mxu0
      %v688 = vadd.f32 0.0, %v687
      %689 = vmatmul.bf16.gmra.mxu0 %v597
      %v690 = vpop.f32.mrf.mxu0
      %v691 = vadd.f32 0.0, %v690
      %v692 = vpop.f32.mrf.mxu0
      %v693 = vadd.f32 0.0, %v692
      %694 = vmatmul.bf16.gmra.mxu0 %v598
      %v695 = vpop.f32.mrf.mxu0
      %v696 = vadd.f32 0.0, %v695
      %v697 = vpop.f32.mrf.mxu0
      %v698 = vadd.f32 0.0, %v697
      %699 = vmatmul.bf16.gmra.mxu0 %v599
      %v700 = vpop.f32.mrf.mxu0
      %v701 = vadd.f32 0.0, %v700
      %v702 = vpop.f32.mrf.mxu0
      %v703 = vadd.f32 0.0, %v702
      %704 = vmatmul.bf16.gmra.mxu0 %v600
      %v705 = vpop.f32.mrf.mxu0
      %v706 = vadd.f32 0.0, %v705
      %v707 = vpop.f32.mrf.mxu0
      %v708 = vadd.f32 0.0, %v707
      %709 = vmatmul.bf16.gmra.mxu0 %v601
      %v710 = vpop.f32.mrf.mxu0
      %v711 = vadd.f32 0.0, %v710
      %v712 = vpop.f32.mrf.mxu0
      %v713 = vadd.f32 0.0, %v712
      %714 = vmatmul.bf16.gmra.mxu0 %v602
      %v715 = vpop.f32.mrf.mxu0
      %v716 = vadd.f32 0.0, %v715
      %v717 = vpop.f32.mrf.mxu0
      %v718 = vadd.f32 0.0, %v717
      %719 = vmatmul.bf16.gmra.mxu0 %v603
      %v720 = vpop.f32.mrf.mxu0
      %v721 = vadd.f32 0.0, %v720
      %v722 = vpop.f32.mrf.mxu0
      %v723 = vadd.f32 0.0, %v722
      %724 = vmatmul.bf16.gmra.mxu0 %v604
      %v725 = vpop.f32.mrf.mxu0
      %v726 = vadd.f32 0.0, %v725
      %v727 = vpop.f32.mrf.mxu0
      %v728 = vadd.f32 0.0, %v727
      %729 = vmatmul.bf16.gmra.mxu0 %v605
      %v730 = vpop.f32.mrf.mxu0
      %v731 = vadd.f32 0.0, %v730
      %v732 = vpop.f32.mrf.mxu0
      %v733 = vadd.f32 0.0, %v732
      %734 = vmatmul.bf16.gmra.mxu0 %v606
      %v735 = vpop.f32.mrf.mxu0
      %v736 = vadd.f32 0.0, %v735
      %v737 = vpop.f32.mrf.mxu0
      %v738 = vadd.f32 0.0, %v737
      %739 = vmatmul.bf16.gmra.mxu0 %v607
      %v740 = vpop.f32.mrf.mxu0
      %v741 = vadd.f32 0.0, %v740
      %v742 = vpop.f32.mrf.mxu0
      %v743 = vadd.f32 0.0, %v742
      %744 = vmatmul.bf16.gmra.mxu0 %v608
      %v745 = vpop.f32.mrf.mxu0
      %v746 = vadd.f32 0.0, %v745
      %v747 = vpop.f32.mrf.mxu0
      %v748 = vadd.f32 0.0, %v747
      %749 = vmatmul.bf16.gmra.mxu0 %v609
      %v750 = vpop.f32.mrf.mxu0
      %v751 = vadd.f32 0.0, %v750
      %v752 = vpop.f32.mrf.mxu0
      %v753 = vadd.f32 0.0, %v752
      %754 = vmatmul.bf16.gmra.mxu0 %v610
      %v755 = vpop.f32.mrf.mxu0
      %v756 = vadd.f32 0.0, %v755
      %v757 = vpop.f32.mrf.mxu0
      %v758 = vadd.f32 0.0, %v757
      %759 = vmatmul.bf16.gmra.mxu0 %v611
      %v760 = vpop.f32.mrf.mxu0
      %v761 = vadd.f32 0.0, %v760
      %v762 = vpop.f32.mrf.mxu0
      %v763 = vadd.f32 0.0, %v762
      %764 = vdwg.mxu0
      %v765 = vld [vmem:[%s5] sm:$0x1]
      %v767 = vperm.slane %v765, 0
      %v769 = vadd.f32 %v686, %v767
      %v770 = vadd.f32 %v688, %v767
      %v771 = vadd.f32 %v691, %v767
      %v772 = vadd.f32 %v693, %v767
      %v773 = vadd.f32 %v696, %v767
      %v774 = vadd.f32 %v698, %v767
      %v775 = vadd.f32 %v701, %v767
      %v776 = vadd.f32 %v703, %v767
      %v777 = vadd.f32 %v706, %v767
      %v778 = vadd.f32 %v708, %v767
      %v779 = vadd.f32 %v711, %v767
      %v780 = vadd.f32 %v713, %v767
      %v781 = vadd.f32 %v716, %v767
      %v782 = vadd.f32 %v718, %v767
      %v783 = vadd.f32 %v721, %v767
      %v784 = vadd.f32 %v723, %v767
      %v785 = vadd.f32 %v726, %v767
      %v786 = vadd.f32 %v728, %v767
      %v787 = vadd.f32 %v731, %v767
      %v788 = vadd.f32 %v733, %v767
      %v789 = vadd.f32 %v736, %v767
      %v790 = vadd.f32 %v738, %v767
      %v791 = vadd.f32 %v741, %v767
      %v792 = vadd.f32 %v743, %v767
      %v793 = vadd.f32 %v746, %v767
      %v794 = vadd.f32 %v748, %v767
      %v795 = vadd.f32 %v751, %v767
      %v796 = vadd.f32 %v753, %v767
      %v797 = vadd.f32 %v756, %v767
      %v798 = vadd.f32 %v758, %v767
      %v799 = vadd.f32 %v761, %v767
      %v800 = vadd.f32 %v763, %v767
      %v801 = vpack.c.bf16 %v769, %v769
      %v802 = vpack.c.bf16 %v770, %v770
      %v803 = vpack.c.bf16 %v771, %v771
      %v804 = vpack.c.bf16 %v772, %v772
      %v805 = vpack.c.bf16 %v773, %v773
      %v806 = vpack.c.bf16 %v774, %v774
      %v807 = vpack.c.bf16 %v775, %v775
      %v808 = vpack.c.bf16 %v776, %v776
      %v809 = vpack.c.bf16 %v777, %v777
      %v810 = vpack.c.bf16 %v778, %v778
      %v811 = vpack.c.bf16 %v779, %v779
      %v812 = vpack.c.bf16 %v780, %v780
      %v813 = vpack.c.bf16 %v781, %v781
      %v814 = vpack.c.bf16 %v782, %v782
      %v815 = vpack.c.bf16 %v783, %v783
      %v816 = vpack.c.bf16 %v784, %v784
      %v817 = vpack.c.bf16 %v785, %v785
      %v818 = vpack.c.bf16 %v786, %v786
      %v819 = vpack.c.bf16 %v787, %v787
      %v820 = vpack.c.bf16 %v788, %v788
      %v821 = vpack.c.bf16 %v789, %v789
      %v822 = vpack.c.bf16 %v790, %v790
      %v823 = vpack.c.bf16 %v791, %v791
      %v824 = vpack.c.bf16 %v792, %v792
      %v825 = vpack.c.bf16 %v793, %v793
      %v826 = vpack.c.bf16 %v794, %v794
      %v827 = vpack.c.bf16 %v795, %v795
      %v828 = vpack.c.bf16 %v796, %v796
      %v829 = vpack.c.bf16 %v797, %v797
      %v830 = vpack.c.bf16 %v798, %v798
      %v831 = vpack.c.bf16 %v799, %v799
      %v832 = vpack.c.bf16 %v800, %v800
      %833 = vst [vmem:[%s343] sm:$0xf] %v801
      %834 = vst [vmem:[%s343 + $0x4] sm:$0xf] %v802
      %835 = vst [vmem:[%s343 + $0x8] sm:$0xf] %v803
      %836 = vst [vmem:[%s343 + $0xc] sm:$0xf] %v804
      %837 = vst [vmem:[%s343 + $0x10] sm:$0xf] %v805
      %838 = vst [vmem:[%s343 + $0x14] sm:$0xf] %v806
      %839 = vst [vmem:[%s343 + $0x18] sm:$0xf] %v807
      %840 = vst [vmem:[%s343 + $0x1c] sm:$0xf] %v808
      %841 = vst [vmem:[%s343 + $0x20] sm:$0xf] %v809
      %842 = vst [vmem:[%s343 + $0x24] sm:$0xf] %v810
      %843 = vst [vmem:[%s343 + $0x28] sm:$0xf] %v811
      %844 = vst [vmem:[%s343 + $0x2c] sm:$0xf] %v812
      %845 = vst [vmem:[%s343 + $0x30] sm:$0xf] %v813
      %846 = vst [vmem:[%s343 + $0x34] sm:$0xf] %v814
      %847 = vst [vmem:[%s343 + $0x38] sm:$0xf] %v815
      %848 = vst [vmem:[%s343 + $0x3c] sm:$0xf] %v816
      %849 = vst [vmem:[%s343 + $0x40] sm:$0xf] %v817
      %850 = vst [vmem:[%s343 + $0x44] sm:$0xf] %v818
      %851 = vst [vmem:[%s343 + $0x48] sm:$0xf] %v819
      %852 = vst [vmem:[%s343 + $0x4c] sm:$0xf] %v820
      %853 = vst [vmem:[%s343 + $0x50] sm:$0xf] %v821
      %854 = vst [vmem:[%s343 + $0x54] sm:$0xf] %v822
      %855 = vst [vmem:[%s343 + $0x58] sm:$0xf] %v823
      %856 = vst [vmem:[%s343 + $0x5c] sm:$0xf] %v824
      %857 = vst [vmem:[%s343 + $0x60] sm:$0xf] %v825
      %858 = vst [vmem:[%s343 + $0x64] sm:$0xf] %v826
      %859 = vst [vmem:[%s343 + $0x68] sm:$0xf] %v827
      %860 = vst [vmem:[%s343 + $0x6c] sm:$0xf] %v828
      %861 = vst [vmem:[%s343 + $0x70] sm:$0xf] %v829
      %862 = vst [vmem:[%s343 + $0x74] sm:$0xf] %v830
      %863 = vst [vmem:[%s343 + $0x78] sm:$0xf] %v831
      %864 = vst [vmem:[%s343 + $0x7c] sm:$0xf] %v832
      %v865 = vld [vmem:[%s349] sm:$0xff]
      %v866 = vadd.f32 %v686, %v688
      %v867 = vadd.f32 %v866, %v691
      %v868 = vadd.f32 %v867, %v693
      %v869 = vadd.f32 %v868, %v696
      %v870 = vadd.f32 %v869, %v698
      %v871 = vadd.f32 %v870, %v701
      %v872 = vadd.f32 %v871, %v703
      %v873 = vadd.f32 %v872, %v706
      %v874 = vadd.f32 %v873, %v708
      %v875 = vadd.f32 %v874, %v711
      %v876 = vadd.f32 %v875, %v713
      %v877 = vadd.f32 %v876, %v716
      %v878 = vadd.f32 %v877, %v718
      %v879 = vadd.f32 %v878, %v721
      %v880 = vadd.f32 %v879, %v723
      %v881 = vadd.f32 %v880, %v726
      %v882 = vadd.f32 %v881, %v728
      %v883 = vadd.f32 %v882, %v731
      %v884 = vadd.f32 %v883, %v733
      %v885 = vadd.f32 %v884, %v736
      %v886 = vadd.f32 %v885, %v738
      %v887 = vadd.f32 %v886, %v741
      %v888 = vadd.f32 %v887, %v743
      %v889 = vadd.f32 %v888, %v746
      %v890 = vadd.f32 %v889, %v748
      %v891 = vadd.f32 %v890, %v751
      %v892 = vadd.f32 %v891, %v753
      %v893 = vadd.f32 %v892, %v756
      %v894 = vadd.f32 %v893, %v758
      %v895 = vadd.f32 %v894, %v761
      %v896 = vadd.f32 %v895, %v763
      %v897 = vrot.slane %v896, 4
      %v898 = vadd.f32 %v896, %v897
      %v899 = vrot.slane %v898, 2
      %v900 = vadd.f32 %v898, %v899
      %v901 = vrot.slane %v900, 1
      %v902 = vadd.f32 %v900, %v901
      %v903 = vadd.f32 %v865, %v902
      %904 = vst [vmem:[%s349] sm:$0xff] %v903
      %v905 = vld [vmem:[%s353] sm:$0xff]
      %v906 = vmul.f32 %v686, %v686
      %v907 = vmul.f32 %v688, %v688
      %v908 = vmul.f32 %v691, %v691
      %v909 = vmul.f32 %v693, %v693
      %v910 = vmul.f32 %v696, %v696
      %v911 = vmul.f32 %v698, %v698
      %v912 = vmul.f32 %v701, %v701
      %v913 = vmul.f32 %v703, %v703
      %v914 = vmul.f32 %v706, %v706
      %v915 = vmul.f32 %v708, %v708
      %v916 = vmul.f32 %v711, %v711
      %v917 = vmul.f32 %v713, %v713
      %v918 = vmul.f32 %v716, %v716
      %v919 = vmul.f32 %v718, %v718
      %v920 = vmul.f32 %v721, %v721
      %v921 = vmul.f32 %v723, %v723
      %v922 = vmul.f32 %v726, %v726
      %v923 = vmul.f32 %v728, %v728
      %v924 = vmul.f32 %v731, %v731
      %v925 = vmul.f32 %v733, %v733
      %v926 = vmul.f32 %v736, %v736
      %v927 = vmul.f32 %v738, %v738
      %v928 = vmul.f32 %v741, %v741
      %v929 = vmul.f32 %v743, %v743
      %v930 = vmul.f32 %v746, %v746
      %v931 = vmul.f32 %v748, %v748
      %v932 = vmul.f32 %v751, %v751
      %v933 = vmul.f32 %v753, %v753
      %v934 = vmul.f32 %v756, %v756
      %v935 = vmul.f32 %v758, %v758
      %v936 = vmul.f32 %v761, %v761
      %v937 = vmul.f32 %v763, %v763
      %v938 = vadd.f32 %v906, %v907
      %v939 = vadd.f32 %v938, %v908
      %v940 = vadd.f32 %v939, %v909
      %v941 = vadd.f32 %v940, %v910
      %v942 = vadd.f32 %v941, %v911
      %v943 = vadd.f32 %v942, %v912
      %v944 = vadd.f32 %v943, %v913
      %v945 = vadd.f32 %v944, %v914
      %v946 = vadd.f32 %v945, %v915
      %v947 = vadd.f32 %v946, %v916
      %v948 = vadd.f32 %v947, %v917
      %v949 = vadd.f32 %v948, %v918
      %v950 = vadd.f32 %v949, %v919
      %v951 = vadd.f32 %v950, %v920
      %v952 = vadd.f32 %v951, %v921
      %v953 = vadd.f32 %v952, %v922
      %v954 = vadd.f32 %v953, %v923
      %v955 = vadd.f32 %v954, %v924
      %v956 = vadd.f32 %v955, %v925
      %v957 = vadd.f32 %v956, %v926
      %v958 = vadd.f32 %v957, %v927
      %v959 = vadd.f32 %v958, %v928
      %v960 = vadd.f32 %v959, %v929
      %v961 = vadd.f32 %v960, %v930
      %v962 = vadd.f32 %v961, %v931
      %v963 = vadd.f32 %v962, %v932
      %v964 = vadd.f32 %v963, %v933
      %v965 = vadd.f32 %v964, %v934
      %v966 = vadd.f32 %v965, %v935
      %v967 = vadd.f32 %v966, %v936
      %v968 = vadd.f32 %v967, %v937
      %v969 = vrot.slane %v968, 4
      %v970 = vadd.f32 %v968, %v969
      %v971 = vrot.slane %v970, 2
      %v972 = vadd.f32 %v970, %v971
      %v973 = vrot.slane %v972, 1
      %v974 = vadd.f32 %v972, %v973
      %v975 = vadd.f32 %v905, %v974
      %976 = vst [vmem:[%s353] sm:$0xff] %v975
      %s977 = sadd.s32 %s24, %s25
      %s978 = smul.u32 32, %s977
      %p979 = scmp.lt.s32.totalorder %s978, 63
      %s980 = scalar_select %p979, %s978, 63
      %s981 = smul.addr %s980, 4
      %s982 = scalar_lea.vmem %s6, %s981
      %p983 = scmp.lt.s32.totalorder %s24, 1
      %s984 = scalar_select %p983, %s24, 1
      %s985 = smul.addr %s984, 8
      %s986 = scalar_lea.vmem %s7, %s985
      %p987 = scmp.lt.s32.totalorder %s24, 1
      %s988 = scalar_select %p987, %s24, 1
      %s989 = smul.addr %s988, 8
      %s990 = scalar_lea.vmem %s8, %s989
      // Predicated region
      $region49: #{dual_conv.2} parent=43 // pred_check
        %p991 = pneg %p185
      $region50: #{dual_conv.2} parent=43 // pred_check_branch
        %993 = sbr.rel (%p991) target = $region52
      $region51: #{dual_conv.2} parent=43 // pred_region
        %s994 = sadd.s32 %s24, %s25
        %s995 = smul.u32 32, %s994
      $region52: #{dual_conv.2} parent=43 // pred_fallthru
        _
      // Predicated region
      $region53: #{dual_conv.2} parent=43 // pred_check
        %p996 = pneg %p211
      $region54: #{dual_conv.2} parent=43 // pred_check_branch
        %998 = sbr.rel (%p996) target = $region56
      $region55: #{dual_conv.2} parent=43 // pred_region
        _
      $region56: #{dual_conv.2} parent=43 // pred_fallthru
        _
      // Predicated region
      $region57: #{dual_conv.2} parent=43 // pred_check
        %p999 = pneg %p237
      $region58: #{dual_conv.2} parent=43 // pred_check_branch
        %1001 = sbr.rel (%p999) target = $region60
      $region59: #{dual_conv.2} parent=43 // pred_region
        _
      $region60: #{dual_conv.2} parent=43 // pred_fallthru
        _
    $region44: #{dual_conv.2} parent=5 // pred_fallthru
      _
    %p1002 = scmp.le.s32.totalorder 2, %s15
    // Predicated region
    $region61: #{dual_conv.2} parent=5 // pred_check
      %p1003 = pneg %p1002
    $region62: #{dual_conv.2} parent=5 // pred_check_branch
      %1005 = sbr.rel (%p1003) target = $region64
    $region63: #{dual_conv.2} parent=5 // pred_region
      %s1006 = ssub.s32 %s15, 2
      // Predicated region
      $region65: #{dual_conv.2} parent=63 // pred_check
        %p1007 = pneg %p191
      $region66: #{dual_conv.2} parent=63 // pred_check_branch
        %1009 = sbr.rel (%p1007) target = $region68
      $region67: #{dual_conv.2} parent=63 // pred_region
        %s1010 = sadd.s32 %s26, %s27
        %s1011 = smul.u32 32, %s1010
        %p1012 = scmp.lt.s32.totalorder %s1011, 63
        %s1013 = scalar_select %p1012, %s1011, 63
        %s1014 = smul.addr %s1013, 4
        %s1015 = scalar_lea.vmem %s6, %s1014
      $region68: #{dual_conv.2} parent=63 // pred_fallthru
        _
      // Predicated region
      $region69: #{dual_conv.2} parent=63 // pred_check
        %p1016 = pneg %p217
      $region70: #{dual_conv.2} parent=63 // pred_check_branch
        %1018 = sbr.rel (%p1016) target = $region72
      $region71: #{dual_conv.2} parent=63 // pred_region
        %p1019 = scmp.lt.s32.totalorder %s26, 1
        %s1020 = scalar_select %p1019, %s26, 1
        %s1021 = smul.addr %s1020, 8
        %s1022 = scalar_lea.vmem %s7, %s1021
      $region72: #{dual_conv.2} parent=63 // pred_fallthru
        _
      // Predicated region
      $region73: #{dual_conv.2} parent=63 // pred_check
        %p1023 = pneg %p243
      $region74: #{dual_conv.2} parent=63 // pred_check_branch
        %1025 = sbr.rel (%p1023) target = $region76
      $region75: #{dual_conv.2} parent=63 // pred_region
        %p1026 = scmp.lt.s32.totalorder %s26, 1
        %s1027 = scalar_select %p1026, %s26, 1
        %s1028 = smul.addr %s1027, 8
        %s1029 = scalar_lea.vmem %s8, %s1028
      $region76: #{dual_conv.2} parent=63 // pred_fallthru
        _
    $region64: #{dual_conv.2} parent=5 // pred_fallthru
      _
  $region6: #{dual_conv.2} parent=0 // loop_footer
    %s19 = sadd.s32 1, %s15
  $region7: #{dual_conv.2} parent=0 // loop_footer_branch
    %14 = sbr.rel target = $region3
  $region8: #{dual_conv.2} parent=0 // loop_exit
    _

// kernel: dual_conv.3
$region0: #{dual_conv.3}
  #allocation0 [shape = 'u32[]', space=smem, size = 0x4, offset = 0x4, fixed_abs, tag = 'smem constant byte address 0x4 - core index']
  #allocation1 [shape = 'u32[72,128]{1,0:T(1,128)}', space=vmem, size = 0x9000, scoped, tag = 'internal scratch']
  %s0 = inlined_call_operand.vmem [shape: bf16[512,128], index: 0, kind: input, shape index: {}]
  %s1 = inlined_call_operand.vmem [shape: f32[1,128], index: 1, kind: input, shape index: {}]
  %s2 = inlined_call_operand.vmem [shape: f32[1,128], index: 2, kind: input, shape index: {}]
  %s3 = inlined_call_operand.vmem [shape: f32[1,128], index: 3, kind: input, shape index: {}]
  %s4 = inlined_call_operand.vmem [shape: bf16[128,128], index: 4, kind: input, shape index: {}]
  %s5 = inlined_call_operand.vmem [shape: f32[1,128], index: 5, kind: input, shape index: {}]
  %s6 = inlined_call_operand.vmem [shape: f32[512,128], index: 6, kind: output, shape index: {}]
  %s7 = sld [smem:[#allocation0]]
  $region57: #{dual_conv.3} parent=0
    _
  %s9 = ssub.s32 1, %s7
  %s10 = scalar_select 0, %s9, %s7
  loop: start=0, step=1, limit=4
  $region2: #{dual_conv.3} parent=0 // loop_pre_header
    _
  $region3: #{dual_conv.3} parent=0 // loop_header
    %s12 = sphi 0, %s16
    %p13 = scmp.ge.s32.totalorder %s12, 4
    %s22 = sphi 0, %s24
    %s25 = sphi 0, %s22
    %s26 = sphi 0, %s25
    %s42 = sphi 0, %s26
    %s46 = sphi 0, %s46
    %s48 = sphi 0, %s46
    %s49 = sphi 0, %s48
    %s63 = sphi 0, %s49
    %s67 = sphi 0, %s67
    %s69 = sphi 0, %s67
    %s70 = sphi 0, %s69
    %s84 = sphi 0, %s70
    %s88 = sphi 0, %s88
    %s90 = sphi 0, %s88
    %s91 = sphi 0, %s90
    %s105 = sphi 0, %s91
    %s109 = sphi 0, %s109
    %s111 = sphi 0, %s109
    %s112 = sphi 0, %s111
    %s126 = sphi 0, %s112
    %s130 = sphi 0, %s130
    %s132 = sphi 0, %s130
    %s133 = sphi 0, %s132
    %s147 = sphi 0, %s133
    %s153 = sphi 0, %s155
    %s156 = sphi 0, %s153
    %s157 = sphi 0, %s156
    %s173 = sphi 0, %s157
  $region4: #{dual_conv.3} parent=0 // loop_header_branch
    %15 = sbr.rel (%p13) target = $region8
  $region5: #{dual_conv.3} parent=0 // loop_body
    %s17 = ssub.s32 %s12, 1
    %s18 = ssub.s32 %s12, 2
    %s19 = sadd.s32 %s12, 1
    %s20 = ssub.s32 %s12, %s19
    %p21 = scmp.eq.s32.totalorder %s20, 0
    %s23 = sadd.s32 %s22, 1
    %s24 = scalar_select %p21, %s22, %s23
    %p27 = pneg %p21
    %p28 = scmp.eq.s32.totalorder %s12, 1
    %p29 = por %p27, %p28
    %p30 = scmp.ne.s32.totalorder %s22, %s25
    %p31 = scmp.eq.s32.totalorder %s12, 0
    %p32 = por %p30, %p31
    %p33 = scmp.ne.s32.totalorder %s22, %s25
    %p34 = scmp.eq.s32.totalorder %s17, 1
    %p35 = por %p33, %p34
    %p36 = scmp.ne.s32.totalorder %s25, %s26
    %p37 = scmp.eq.s32.totalorder %s17, 0
    %p38 = por %p36, %p37
    %p39 = scmp.ne.s32.totalorder %s25, %s26
    %p40 = scmp.eq.s32.totalorder %s18, 1
    %p41 = por %p39, %p40
    %p43 = scmp.ne.s32.totalorder %s26, %s42
    %p44 = scmp.eq.s32.totalorder %s18, 0
    %p45 = por %p43, %p44
    %s47 = sadd.s32 %s46, 1
    %p50 = scmp.eq.s32.totalorder %s12, 1
    %p51 = scmp.ne.s32.totalorder %s46, %s48
    %p52 = scmp.eq.s32.totalorder %s12, 0
    %p53 = por %p51, %p52
    %p54 = scmp.ne.s32.totalorder %s46, %s48
    %p55 = scmp.eq.s32.totalorder %s17, 1
    %p56 = por %p54, %p55
    %p57 = scmp.ne.s32.totalorder %s48, %s49
    %p58 = scmp.eq.s32.totalorder %s17, 0
    %p59 = por %p57, %p58
    %p60 = scmp.ne.s32.totalorder %s48, %s49
    %p61 = scmp.eq.s32.totalorder %s18, 1
    %p62 = por %p60, %p61
    %p64 = scmp.ne.s32.totalorder %s49, %s63
    %p65 = scmp.eq.s32.totalorder %s18, 0
    %p66 = por %p64, %p65
    %s68 = sadd.s32 %s67, 1
    %p71 = scmp.eq.s32.totalorder %s12, 1
    %p72 = scmp.ne.s32.totalorder %s67, %s69
    %p73 = scmp.eq.s32.totalorder %s12, 0
    %p74 = por %p72, %p73
    %p75 = scmp.ne.s32.totalorder %s67, %s69
    %p76 = scmp.eq.s32.totalorder %s17, 1
    %p77 = por %p75, %p76
    %p78 = scmp.ne.s32.totalorder %s69, %s70
    %p79 = scmp.eq.s32.totalorder %s17, 0
    %p80 = por %p78, %p79
    %p81 = scmp.ne.s32.totalorder %s69, %s70
    %p82 = scmp.eq.s32.totalorder %s18, 1
    %p83 = por %p81, %p82
    %p85 = scmp.ne.s32.totalorder %s70, %s84
    %p86 = scmp.eq.s32.totalorder %s18, 0
    %p87 = por %p85, %p86
    %s89 = sadd.s32 %s88, 1
    %p92 = scmp.eq.s32.totalorder %s12, 1
    %p93 = scmp.ne.s32.totalorder %s88, %s90
    %p94 = scmp.eq.s32.totalorder %s12, 0
    %p95 = por %p93, %p94
    %p96 = scmp.ne.s32.totalorder %s88, %s90
    %p97 = scmp.eq.s32.totalorder %s17, 1
    %p98 = por %p96, %p97
    %p99 = scmp.ne.s32.totalorder %s90, %s91
    %p100 = scmp.eq.s32.totalorder %s17, 0
    %p101 = por %p99, %p100
    %p102 = scmp.ne.s32.totalorder %s90, %s91
    %p103 = scmp.eq.s32.totalorder %s18, 1
    %p104 = por %p102, %p103
    %p106 = scmp.ne.s32.totalorder %s91, %s105
    %p107 = scmp.eq.s32.totalorder %s18, 0
    %p108 = por %p106, %p107
    %s110 = sadd.s32 %s109, 1
    %p113 = scmp.eq.s32.totalorder %s12, 1
    %p114 = scmp.ne.s32.totalorder %s109, %s111
    %p115 = scmp.eq.s32.totalorder %s12, 0
    %p116 = por %p114, %p115
    %p117 = scmp.ne.s32.totalorder %s109, %s111
    %p118 = scmp.eq.s32.totalorder %s17, 1
    %p119 = por %p117, %p118
    %p120 = scmp.ne.s32.totalorder %s111, %s112
    %p121 = scmp.eq.s32.totalorder %s17, 0
    %p122 = por %p120, %p121
    %p123 = scmp.ne.s32.totalorder %s111, %s112
    %p124 = scmp.eq.s32.totalorder %s18, 1
    %p125 = por %p123, %p124
    %p127 = scmp.ne.s32.totalorder %s112, %s126
    %p128 = scmp.eq.s32.totalorder %s18, 0
    %p129 = por %p127, %p128
    %s131 = sadd.s32 %s130, 1
    %p134 = scmp.eq.s32.totalorder %s12, 1
    %p135 = scmp.ne.s32.totalorder %s130, %s132
    %p136 = scmp.eq.s32.totalorder %s12, 0
    %p137 = por %p135, %p136
    %p138 = scmp.ne.s32.totalorder %s130, %s132
    %p139 = scmp.eq.s32.totalorder %s17, 1
    %p140 = por %p138, %p139
    %p141 = scmp.ne.s32.totalorder %s132, %s133
    %p142 = scmp.eq.s32.totalorder %s17, 0
    %p143 = por %p141, %p142
    %p144 = scmp.ne.s32.totalorder %s132, %s133
    %p145 = scmp.eq.s32.totalorder %s18, 1
    %p146 = por %p144, %p145
    %p148 = scmp.ne.s32.totalorder %s133, %s147
    %p149 = scmp.eq.s32.totalorder %s18, 0
    %p150 = por %p148, %p149
    %s151 = ssub.s32 %s12, %s19
    %p152 = scmp.eq.s32.totalorder %s151, 0
    %s154 = sadd.s32 %s153, 1
    %s155 = scalar_select %p152, %s153, %s154
    %p158 = pneg %p152
    %p159 = scmp.eq.s32.totalorder %s12, 1
    %p160 = por %p158, %p159
    %p161 = scmp.ne.s32.totalorder %s153, %s156
    %p162 = scmp.eq.s32.totalorder %s12, 0
    %p163 = por %p161, %p162
    %p164 = scmp.ne.s32.totalorder %s153, %s156
    %p165 = scmp.eq.s32.totalorder %s17, 1
    %p166 = por %p164, %p165
    %p167 = scmp.ne.s32.totalorder %s156, %s157
    %p168 = scmp.eq.s32.totalorder %s17, 0
    %p169 = por %p167, %p168
    %p170 = scmp.ne.s32.totalorder %s156, %s157
    %p171 = scmp.eq.s32.totalorder %s18, 1
    %p172 = por %p170, %p171
    %p174 = scmp.ne.s32.totalorder %s157, %s173
    %p175 = scmp.eq.s32.totalorder %s18, 0
    %p176 = por %p174, %p175
    %p177 = scmp.le.s32.totalorder 1, %s12
    %p178 = scmp.lt.s32.totalorder %s12, 3
    %p179 = pnand %p177, %p178
    %p180 = pneg %p179
    // Predicated region
    $region9: #{dual_conv.3} parent=5 // pred_check
      _
    $region10: #{dual_conv.3} parent=5 // pred_check_branch
      %182 = sbr.rel (%p179) target = $region12
    $region11: #{dual_conv.3} parent=5 // pred_region
      %s183 = ssub.s32 %s12, 1
      // Predicated region
      $region13: #{dual_conv.3} parent=11 // pred_check
        %p184 = pneg %p59
      $region14: #{dual_conv.3} parent=11 // pred_check_branch
        %186 = sbr.rel (%p184) target = $region16
      $region15: #{dual_conv.3} parent=11 // pred_region
        _
      $region16: #{dual_conv.3} parent=11 // pred_fallthru
        _
      // Predicated region
      $region17: #{dual_conv.3} parent=11 // pred_check
        %p187 = pneg %p80
      $region18: #{dual_conv.3} parent=11 // pred_check_branch
        %189 = sbr.rel (%p187) target = $region20
      $region19: #{dual_conv.3} parent=11 // pred_region
        _
      $region20: #{dual_conv.3} parent=11 // pred_fallthru
        _
      // Predicated region
      $region21: #{dual_conv.3} parent=11 // pred_check
        %p190 = pneg %p101
      $region22: #{dual_conv.3} parent=11 // pred_check_branch
        %192 = sbr.rel (%p190) target = $region24
      $region23: #{dual_conv.3} parent=11 // pred_region
        _
      $region24: #{dual_conv.3} parent=11 // pred_fallthru
        _
      // Predicated region
      $region25: #{dual_conv.3} parent=11 // pred_check
        %p193 = pneg %p122
      $region26: #{dual_conv.3} parent=11 // pred_check_branch
        %195 = sbr.rel (%p193) target = $region28
      $region27: #{dual_conv.3} parent=11 // pred_region
        _
      $region28: #{dual_conv.3} parent=11 // pred_fallthru
        _
      // Predicated region
      $region29: #{dual_conv.3} parent=11 // pred_check
        %p196 = pneg %p143
      $region30: #{dual_conv.3} parent=11 // pred_check_branch
        %198 = sbr.rel (%p196) target = $region32
      $region31: #{dual_conv.3} parent=11 // pred_region
        _
      $region32: #{dual_conv.3} parent=11 // pred_fallthru
        _
    $region12: #{dual_conv.3} parent=5 // pred_fallthru
      _
    %p199 = scmp.lt.s32.totalorder %s12, 2
    // Predicated region
    $region33: #{dual_conv.3} parent=5 // pred_check
      %p200 = pneg %p199
    $region34: #{dual_conv.3} parent=5 // pred_check_branch
      %202 = sbr.rel (%p200) target = $region36
    $region35: #{dual_conv.3} parent=5 // pred_region
      // Predicated region
      $region37: #{dual_conv.3} parent=35 // pred_check
        %p203 = pneg %p32
      $region38: #{dual_conv.3} parent=35 // pred_check_branch
        %205 = sbr.rel (%p203) target = $region40
      $region39: #{dual_conv.3} parent=35 // pred_region
        %s206 = smul.u32 32, %s12
        %p207 = scmp.lt.s32.totalorder %s206, 63
        %s208 = scalar_select %p207, %s206, 63
        %s209 = smul.addr %s208, 4
        %s210 = scalar_lea.vmem %s0, %s209
        %s211 = smul.u32 32, %s12
      $region40: #{dual_conv.3} parent=35 // pred_fallthru
        _
    $region36: #{dual_conv.3} parent=5 // pred_fallthru
      _
    %p212 = scmp.le.s32.totalorder 1, %s12
    %p213 = scmp.lt.s32.totalorder %s12, 3
    %p214 = pnand %p212, %p213
    %p215 = pneg %p214
    // Predicated region
    $region41: #{dual_conv.3} parent=5 // pred_check
      _
    $region42: #{dual_conv.3} parent=5 // pred_check_branch
      %217 = sbr.rel (%p214) target = $region44
    $region43: #{dual_conv.3} parent=5 // pred_region
      %s218 = ssub.s32 %s12, 1
      %s219 = smul.u32 32, %s17
      %p220 = scmp.lt.s32.totalorder %s219, 63
      %s221 = scalar_select %p220, %s219, 63
      %s222 = smul.addr %s221, 4
      %s223 = scalar_lea.vmem %s0, %s222
      %p224 = pneg %p38
      %p225 = pneg %p35
      %p226 = pneg %p59
      %p227 = pneg %p56
      %p228 = pneg %p80
      %p229 = pneg %p77
      %p230 = pneg %p101
      %p231 = pneg %p98
      %p232 = pneg %p122
      %p233 = pneg %p119
      %p234 = pneg %p143
      %p235 = pneg %p140
      %p236 = pneg %p169
      %p237 = pneg %p166
      %s238 = smul.u32 32, %s17
      %p239 = scmp.lt.s32.totalorder %s238, 63
      %s240 = scalar_select %p239, %s238, 63
      %s241 = smul.addr %s240, 8
      %s242 = scalar_lea.vmem %s6, %s241
      %s243 = smul.u32 32, %s17
      %p244 = scmp.lt.s32.totalorder %s243, 63
      %s245 = scalar_select %p244, %s243, 63
      %s246 = smul.addr %s245, 4
      %s247 = scalar_lea.vmem %s0, %s246
      %s248 = smul.u32 32, %s17
      %s249 = smul.u32 32, %s17
      %p250 = scmp.lt.s32.totalorder %s249, 63
      %s251 = scalar_select %p250, %s249, 63
      %s252 = smul.addr %s251, 8
      %s253 = scalar_lea.vmem %s6, %s252
      %s254 = smul.u32 32, %s17
      %v255 = vld [vmem:[%s247] sm:$0xf]
      %v256 = vld [vmem:[%s247 + $0x4] sm:$0xf]
      %v257 = vld [vmem:[%s247 + $0x8] sm:$0xf]
      %v258 = vld [vmem:[%s247 + $0xc] sm:$0xf]
      %v259 = vld [vmem:[%s247 + $0x10] sm:$0xf]
      %v260 = vld [vmem:[%s247 + $0x14] sm:$0xf]
      %v261 = vld [vmem:[%s247 + $0x18] sm:$0xf]
      %v262 = vld [vmem:[%s247 + $0x1c] sm:$0xf]
      %v263 = vld [vmem:[%s247 + $0x20] sm:$0xf]
      %v264 = vld [vmem:[%s247 + $0x24] sm:$0xf]
      %v265 = vld [vmem:[%s247 + $0x28] sm:$0xf]
      %v266 = vld [vmem:[%s247 + $0x2c] sm:$0xf]
      %v267 = vld [vmem:[%s247 + $0x30] sm:$0xf]
      %v268 = vld [vmem:[%s247 + $0x34] sm:$0xf]
      %v269 = vld [vmem:[%s247 + $0x38] sm:$0xf]
      %v270 = vld [vmem:[%s247 + $0x3c] sm:$0xf]
      %v271 = vld [vmem:[%s247 + $0x40] sm:$0xf]
      %v272 = vld [vmem:[%s247 + $0x44] sm:$0xf]
      %v273 = vld [vmem:[%s247 + $0x48] sm:$0xf]
      %v274 = vld [vmem:[%s247 + $0x4c] sm:$0xf]
      %v275 = vld [vmem:[%s247 + $0x50] sm:$0xf]
      %v276 = vld [vmem:[%s247 + $0x54] sm:$0xf]
      %v277 = vld [vmem:[%s247 + $0x58] sm:$0xf]
      %v278 = vld [vmem:[%s247 + $0x5c] sm:$0xf]
      %v279 = vld [vmem:[%s247 + $0x60] sm:$0xf]
      %v280 = vld [vmem:[%s247 + $0x64] sm:$0xf]
      %v281 = vld [vmem:[%s247 + $0x68] sm:$0xf]
      %v282 = vld [vmem:[%s247 + $0x6c] sm:$0xf]
      %v283 = vld [vmem:[%s247 + $0x70] sm:$0xf]
      %v284 = vld [vmem:[%s247 + $0x74] sm:$0xf]
      %v285 = vld [vmem:[%s247 + $0x78] sm:$0xf]
      %v286 = vld [vmem:[%s247 + $0x7c] sm:$0xf]
      %v287 = vunpack.c.l.bf16 %v255
      %v288 = vunpack.c.l.bf16 %v256
      %v289 = vunpack.c.l.bf16 %v257
      %v290 = vunpack.c.l.bf16 %v258
      %v291 = vunpack.c.l.bf16 %v259
      %v292 = vunpack.c.l.bf16 %v260
      %v293 = vunpack.c.l.bf16 %v261
      %v294 = vunpack.c.l.bf16 %v262
      %v295 = vunpack.c.l.bf16 %v263
      %v296 = vunpack.c.l.bf16 %v264
      %v297 = vunpack.c.l.bf16 %v265
      %v298 = vunpack.c.l.bf16 %v266
      %v299 = vunpack.c.l.bf16 %v267
      %v300 = vunpack.c.l.bf16 %v268
      %v301 = vunpack.c.l.bf16 %v269
      %v302 = vunpack.c.l.bf16 %v270
      %v303 = vunpack.c.l.bf16 %v271
      %v304 = vunpack.c.l.bf16 %v272
      %v305 = vunpack.c.l.bf16 %v273
      %v306 = vunpack.c.l.bf16 %v274
      %v307 = vunpack.c.l.bf16 %v275
      %v308 = vunpack.c.l.bf16 %v276
      %v309 = vunpack.c.l.bf16 %v277
      %v310 = vunpack.c.l.bf16 %v278
      %v311 = vunpack.c.l.bf16 %v279
      %v312 = vunpack.c.l.bf16 %v280
      %v313 = vunpack.c.l.bf16 %v281
      %v314 = vunpack.c.l.bf16 %v282
      %v315 = vunpack.c.l.bf16 %v283
      %v316 = vunpack.c.l.bf16 %v284
      %v317 = vunpack.c.l.bf16 %v285
      %v318 = vunpack.c.l.bf16 %v286
      %v319 = vld [vmem:[%s1] sm:$0x1]
      %v321 = vperm.slane %v319, 0
      %v323 = vmul.f32 %v287, %v321
      %v324 = vmul.f32 %v288, %v321
      %v325 = vmul.f32 %v289, %v321
      %v326 = vmul.f32 %v290, %v321
      %v327 = vmul.f32 %v291, %v321
      %v328 = vmul.f32 %v292, %v321
      %v329 = vmul.f32 %v293, %v321
      %v330 = vmul.f32 %v294, %v321
      %v331 = vmul.f32 %v295, %v321
      %v332 = vmul.f32 %v296, %v321
      %v333 = vmul.f32 %v297, %v321
      %v334 = vmul.f32 %v298, %v321
      %v335 = vmul.f32 %v299, %v321
      %v336 = vmul.f32 %v300, %v321
      %v337 = vmul.f32 %v301, %v321
      %v338 = vmul.f32 %v302, %v321
      %v339 = vmul.f32 %v303, %v321
      %v340 = vmul.f32 %v304, %v321
      %v341 = vmul.f32 %v305, %v321
      %v342 = vmul.f32 %v306, %v321
      %v343 = vmul.f32 %v307, %v321
      %v344 = vmul.f32 %v308, %v321
      %v345 = vmul.f32 %v309, %v321
      %v346 = vmul.f32 %v310, %v321
      %v347 = vmul.f32 %v311, %v321
      %v348 = vmul.f32 %v312, %v321
      %v349 = vmul.f32 %v313, %v321
      %v350 = vmul.f32 %v314, %v321
      %v351 = vmul.f32 %v315, %v321
      %v352 = vmul.f32 %v316, %v321
      %v353 = vmul.f32 %v317, %v321
      %v354 = vmul.f32 %v318, %v321
      %v355 = vld [vmem:[%s2] sm:$0x1]
      %v357 = vperm.slane %v355, 0
      %v359 = vadd.f32 %v323, %v357
      %v360 = vadd.f32 %v324, %v357
      %v361 = vadd.f32 %v325, %v357
      %v362 = vadd.f32 %v326, %v357
      %v363 = vadd.f32 %v327, %v357
      %v364 = vadd.f32 %v328, %v357
      %v365 = vadd.f32 %v329, %v357
      %v366 = vadd.f32 %v330, %v357
      %v367 = vadd.f32 %v331, %v357
      %v368 = vadd.f32 %v332, %v357
      %v369 = vadd.f32 %v333, %v357
      %v370 = vadd.f32 %v334, %v357
      %v371 = vadd.f32 %v335, %v357
      %v372 = vadd.f32 %v336, %v357
      %v373 = vadd.f32 %v337, %v357
      %v374 = vadd.f32 %v338, %v357
      %v375 = vadd.f32 %v339, %v357
      %v376 = vadd.f32 %v340, %v357
      %v377 = vadd.f32 %v341, %v357
      %v378 = vadd.f32 %v342, %v357
      %v379 = vadd.f32 %v343, %v357
      %v380 = vadd.f32 %v344, %v357
      %v381 = vadd.f32 %v345, %v357
      %v382 = vadd.f32 %v346, %v357
      %v383 = vadd.f32 %v347, %v357
      %v384 = vadd.f32 %v348, %v357
      %v385 = vadd.f32 %v349, %v357
      %v386 = vadd.f32 %v350, %v357
      %v387 = vadd.f32 %v351, %v357
      %v388 = vadd.f32 %v352, %v357
      %v389 = vadd.f32 %v353, %v357
      %v390 = vadd.f32 %v354, %v357
      %vm391 = vcmp.ge.f32.partialorder %v359, 0.0
      %vm392 = vcmp.ge.f32.partialorder %v360, 0.0
      %vm393 = vcmp.ge.f32.partialorder %v361, 0.0
      %vm394 = vcmp.ge.f32.partialorder %v362, 0.0
      %vm395 = vcmp.ge.f32.partialorder %v363, 0.0
      %vm396 = vcmp.ge.f32.partialorder %v364, 0.0
      %vm397 = vcmp.ge.f32.partialorder %v365, 0.0
      %vm398 = vcmp.ge.f32.partialorder %v366, 0.0
      %vm399 = vcmp.ge.f32.partialorder %v367, 0.0
      %vm400 = vcmp.ge.f32.partialorder %v368, 0.0
      %vm401 = vcmp.ge.f32.partialorder %v369, 0.0
      %vm402 = vcmp.ge.f32.partialorder %v370, 0.0
      %vm403 = vcmp.ge.f32.partialorder %v371, 0.0
      %vm404 = vcmp.ge.f32.partialorder %v372, 0.0
      %vm405 = vcmp.ge.f32.partialorder %v373, 0.0
      %vm406 = vcmp.ge.f32.partialorder %v374, 0.0
      %vm407 = vcmp.ge.f32.partialorder %v375, 0.0
      %vm408 = vcmp.ge.f32.partialorder %v376, 0.0
      %vm409 = vcmp.ge.f32.partialorder %v377, 0.0
      %vm410 = vcmp.ge.f32.partialorder %v378, 0.0
      %vm411 = vcmp.ge.f32.partialorder %v379, 0.0
      %vm412 = vcmp.ge.f32.partialorder %v380, 0.0
      %vm413 = vcmp.ge.f32.partialorder %v381, 0.0
      %vm414 = vcmp.ge.f32.partialorder %v382, 0.0
      %vm415 = vcmp.ge.f32.partialorder %v383, 0.0
      %vm416 = vcmp.ge.f32.partialorder %v384, 0.0
      %vm417 = vcmp.ge.f32.partialorder %v385, 0.0
      %vm418 = vcmp.ge.f32.partialorder %v386, 0.0
      %vm419 = vcmp.ge.f32.partialorder %v387, 0.0
      %vm420 = vcmp.ge.f32.partialorder %v388, 0.0
      %vm421 = vcmp.ge.f32.partialorder %v389, 0.0
      %vm422 = vcmp.ge.f32.partialorder %v390, 0.0
      %v423 = vld [vmem:[%s3] sm:$0x1]
      %v425 = vperm.slane %v423, 0
      %v427 = vmul.f32 %v425, %v359
      %v428 = vmul.f32 %v425, %v360
      %v429 = vmul.f32 %v425, %v361
      %v430 = vmul.f32 %v425, %v362
      %v431 = vmul.f32 %v425, %v363
      %v432 = vmul.f32 %v425, %v364
      %v433 = vmul.f32 %v425, %v365
      %v434 = vmul.f32 %v425, %v366
      %v435 = vmul.f32 %v425, %v367
      %v436 = vmul.f32 %v425, %v368
      %v437 = vmul.f32 %v425, %v369
      %v438 = vmul.f32 %v425, %v370
      %v439 = vmul.f32 %v425, %v371
      %v440 = vmul.f32 %v425, %v372
      %v441 = vmul.f32 %v425, %v373
      %v442 = vmul.f32 %v425, %v374
      %v443 = vmul.f32 %v425, %v375
      %v444 = vmul.f32 %v425, %v376
      %v445 = vmul.f32 %v425, %v377
      %v446 = vmul.f32 %v425, %v378
      %v447 = vmul.f32 %v425, %v379
      %v448 = vmul.f32 %v425, %v380
      %v449 = vmul.f32 %v425, %v381
      %v450 = vmul.f32 %v425, %v382
      %v451 = vmul.f32 %v425, %v383
      %v452 = vmul.f32 %v425, %v384
      %v453 = vmul.f32 %v425, %v385
      %v454 = vmul.f32 %v425, %v386
      %v455 = vmul.f32 %v425, %v387
      %v456 = vmul.f32 %v425, %v388
      %v457 = vmul.f32 %v425, %v389
      %v458 = vmul.f32 %v425, %v390
      %v459 = vsel %vm391, %v359, %v427
      %v460 = vsel %vm392, %v360, %v428
      %v461 = vsel %vm393, %v361, %v429
      %v462 = vsel %vm394, %v362, %v430
      %v463 = vsel %vm395, %v363, %v431
      %v464 = vsel %vm396, %v364, %v432
      %v465 = vsel %vm397, %v365, %v433
      %v466 = vsel %vm398, %v366, %v434
      %v467 = vsel %vm399, %v367, %v435
      %v468 = vsel %vm400, %v368, %v436
      %v469 = vsel %vm401, %v369, %v437
      %v470 = vsel %vm402, %v370, %v438
      %v471 = vsel %vm403, %v371, %v439
      %v472 = vsel %vm404, %v372, %v440
      %v473 = vsel %vm405, %v373, %v441
      %v474 = vsel %vm406, %v374, %v442
      %v475 = vsel %vm407, %v375, %v443
      %v476 = vsel %vm408, %v376, %v444
      %v477 = vsel %vm409, %v377, %v445
      %v478 = vsel %vm410, %v378, %v446
      %v479 = vsel %vm411, %v379, %v447
      %v480 = vsel %vm412, %v380, %v448
      %v481 = vsel %vm413, %v381, %v449
      %v482 = vsel %vm414, %v382, %v450
      %v483 = vsel %vm415, %v383, %v451
      %v484 = vsel %vm416, %v384, %v452
      %v485 = vsel %vm417, %v385, %v453
      %v486 = vsel %vm418, %v386, %v454
      %v487 = vsel %vm419, %v387, %v455
      %v488 = vsel %vm420, %v388, %v456
      %v489 = vsel %vm421, %v389, %v457
      %v490 = vsel %vm422, %v390, %v458
      %v491 = vpack.c.bf16 %v460, %v459
      %v492 = vpack.c.bf16 %v462, %v461
      %v493 = vpack.c.bf16 %v464, %v463
      %v494 = vpack.c.bf16 %v466, %v465
      %v495 = vpack.c.bf16 %v468, %v467
      %v496 = vpack.c.bf16 %v470, %v469
      %v497 = vpack.c.bf16 %v472, %v471
      %v498 = vpack.c.bf16 %v474, %v473
      %v499 = vpack.c.bf16 %v476, %v475
      %v500 = vpack.c.bf16 %v478, %v477
      %v501 = vpack.c.bf16 %v480, %v479
      %v502 = vpack.c.bf16 %v482, %v481
      %v503 = vpack.c.bf16 %v484, %v483
      %v504 = vpack.c.bf16 %v486, %v485
      %v505 = vpack.c.bf16 %v488, %v487
      %v506 = vpack.c.bf16 %v490, %v489
      %v507 = vld [vmem:[%s4] sm:$0xf]
      %v508 = vld [vmem:[%s4 + $0x4] sm:$0xf]
      %v509 = vld [vmem:[%s4 + $0x8] sm:$0xf]
      %v510 = vld [vmem:[%s4 + $0xc] sm:$0xf]
      %v511 = vld [vmem:[%s4 + $0x10] sm:$0xf]
      %v512 = vld [vmem:[%s4 + $0x14] sm:$0xf]
      %v513 = vld [vmem:[%s4 + $0x18] sm:$0xf]
      %v514 = vld [vmem:[%s4 + $0x1c] sm:$0xf]
      %v515 = vld [vmem:[%s4 + $0x20] sm:$0xf]
      %v516 = vld [vmem:[%s4 + $0x24] sm:$0xf]
      %v517 = vld [vmem:[%s4 + $0x28] sm:$0xf]
      %v518 = vld [vmem:[%s4 + $0x2c] sm:$0xf]
      %v519 = vld [vmem:[%s4 + $0x30] sm:$0xf]
      %v520 = vld [vmem:[%s4 + $0x34] sm:$0xf]
      %v521 = vld [vmem:[%s4 + $0x38] sm:$0xf]
      %v522 = vld [vmem:[%s4 + $0x3c] sm:$0xf]
      %v523 = vld [vmem:[%s5] sm:$0x1]
      %v525 = vperm.slane %v523, 0
      %v543 = vunpack.c.l.b16 %v507
      %v544 = vunpack.c.l.b16 %v508
      %v545 = vunpack.c.l.b16 %v509
      %v546 = vunpack.c.l.b16 %v510
      %v547 = vunpack.c.l.b16 %v511
      %v548 = vunpack.c.l.b16 %v512
      %v549 = vunpack.c.l.b16 %v513
      %v550 = vunpack.c.l.b16 %v514
      %v551 = vunpack.c.l.b16 %v515
      %v552 = vunpack.c.l.b16 %v516
      %v553 = vunpack.c.l.b16 %v517
      %v554 = vunpack.c.l.b16 %v518
      %v555 = vunpack.c.l.b16 %v519
      %v556 = vunpack.c.l.b16 %v520
      %v557 = vunpack.c.l.b16 %v521
      %v558 = vunpack.c.l.b16 %v522
      %v559 = vpack.c.b16 %v544, %v543
      %v560 = vpack.c.b16 %v546, %v545
      %v561 = vpack.c.b16 %v548, %v547
      %v562 = vpack.c.b16 %v550, %v549
      %v563 = vpack.c.b16 %v552, %v551
      %v564 = vpack.c.b16 %v554, %v553
      %v565 = vpack.c.b16 %v556, %v555
      %v566 = vpack.c.b16 %v558, %v557
      %575 = vmatpush.bf16.msra.mxu0 %v566
      %576 = vmatpush.bf16.msra.mxu0 %v565
      %577 = vmatpush.bf16.msra.mxu0 %v564
      %578 = vmatpush.bf16.msra.mxu0 %v563
      %579 = vmatpush.bf16.msra.mxu0 %v562
      %580 = vmatpush.bf16.msra.mxu0 %v561
      %581 = vmatpush.bf16.msra.mxu0 %v560
      %582 = vmatpush.bf16.msra.mxu0 %v559
      %583 = vmatmul.bf16.gmra.mxu0 %v491
      %v584 = vpop.f32.mrf.mxu0
      %v585 = vadd.f32 %v525, %v584
      %v586 = vpop.f32.mrf.mxu0
      %v587 = vadd.f32 %v525, %v586
      %588 = vmatmul.bf16.gmra.mxu0 %v492
      %v589 = vpop.f32.mrf.mxu0
      %v590 = vadd.f32 %v525, %v589
      %v591 = vpop.f32.mrf.mxu0
      %v592 = vadd.f32 %v525, %v591
      %593 = vmatmul.bf16.gmra.mxu0 %v493
      %v594 = vpop.f32.mrf.mxu0
      %v595 = vadd.f32 %v525, %v594
      %v596 = vpop.f32.mrf.mxu0
      %v597 = vadd.f32 %v525, %v596
      %598 = vmatmul.bf16.gmra.mxu0 %v494
      %v599 = vpop.f32.mrf.mxu0
      %v600 = vadd.f32 %v525, %v599
      %v601 = vpop.f32.mrf.mxu0
      %v602 = vadd.f32 %v525, %v601
      %603 = vmatmul.bf16.gmra.mxu0 %v495
      %v604 = vpop.f32.mrf.mxu0
      %v605 = vadd.f32 %v525, %v604
      %v606 = vpop.f32.mrf.mxu0
      %v607 = vadd.f32 %v525, %v606
      %608 = vmatmul.bf16.gmra.mxu0 %v496
      %v609 = vpop.f32.mrf.mxu0
      %v610 = vadd.f32 %v525, %v609
      %v611 = vpop.f32.mrf.mxu0
      %v612 = vadd.f32 %v525, %v611
      %613 = vmatmul.bf16.gmra.mxu0 %v497
      %v614 = vpop.f32.mrf.mxu0
      %v615 = vadd.f32 %v525, %v614
      %v616 = vpop.f32.mrf.mxu0
      %v617 = vadd.f32 %v525, %v616
      %618 = vmatmul.bf16.gmra.mxu0 %v498
      %v619 = vpop.f32.mrf.mxu0
      %v620 = vadd.f32 %v525, %v619
      %v621 = vpop.f32.mrf.mxu0
      %v622 = vadd.f32 %v525, %v621
      %623 = vmatmul.bf16.gmra.mxu0 %v499
      %v624 = vpop.f32.mrf.mxu0
      %v625 = vadd.f32 %v525, %v624
      %v626 = vpop.f32.mrf.mxu0
      %v627 = vadd.f32 %v525, %v626
      %628 = vmatmul.bf16.gmra.mxu0 %v500
      %v629 = vpop.f32.mrf.mxu0
      %v630 = vadd.f32 %v525, %v629
      %v631 = vpop.f32.mrf.mxu0
      %v632 = vadd.f32 %v525, %v631
      %633 = vmatmul.bf16.gmra.mxu0 %v501
      %v634 = vpop.f32.mrf.mxu0
      %v635 = vadd.f32 %v525, %v634
      %v636 = vpop.f32.mrf.mxu0
      %v637 = vadd.f32 %v525, %v636
      %638 = vmatmul.bf16.gmra.mxu0 %v502
      %v639 = vpop.f32.mrf.mxu0
      %v640 = vadd.f32 %v525, %v639
      %v641 = vpop.f32.mrf.mxu0
      %v642 = vadd.f32 %v525, %v641
      %643 = vmatmul.bf16.gmra.mxu0 %v503
      %v644 = vpop.f32.mrf.mxu0
      %v645 = vadd.f32 %v525, %v644
      %v646 = vpop.f32.mrf.mxu0
      %v647 = vadd.f32 %v525, %v646
      %648 = vmatmul.bf16.gmra.mxu0 %v504
      %v649 = vpop.f32.mrf.mxu0
      %v650 = vadd.f32 %v525, %v649
      %v651 = vpop.f32.mrf.mxu0
      %v652 = vadd.f32 %v525, %v651
      %653 = vmatmul.bf16.gmra.mxu0 %v505
      %v654 = vpop.f32.mrf.mxu0
      %v655 = vadd.f32 %v525, %v654
      %v656 = vpop.f32.mrf.mxu0
      %v657 = vadd.f32 %v525, %v656
      %658 = vmatmul.bf16.gmra.mxu0 %v506
      %v659 = vpop.f32.mrf.mxu0
      %v660 = vadd.f32 %v525, %v659
      %v661 = vpop.f32.mrf.mxu0
      %v662 = vadd.f32 %v525, %v661
      %663 = vdwg.mxu0
      %664 = vst [vmem:[%s253] sm:$0xff] %v585
      %665 = vst [vmem:[%s253 + $0x8] sm:$0xff] %v587
      %666 = vst [vmem:[%s253 + $0x10] sm:$0xff] %v590
      %667 = vst [vmem:[%s253 + $0x18] sm:$0xff] %v592
      %668 = vst [vmem:[%s253 + $0x20] sm:$0xff] %v595
      %669 = vst [vmem:[%s253 + $0x28] sm:$0xff] %v597
      %670 = vst [vmem:[%s253 + $0x30] sm:$0xff] %v600
      %671 = vst [vmem:[%s253 + $0x38] sm:$0xff] %v602
      %672 = vst [vmem:[%s253 + $0x40] sm:$0xff] %v605
      %673 = vst [vmem:[%s253 + $0x48] sm:$0xff] %v607
      %674 = vst [vmem:[%s253 + $0x50] sm:$0xff] %v610
      %675 = vst [vmem:[%s253 + $0x58] sm:$0xff] %v612
      %676 = vst [vmem:[%s253 + $0x60] sm:$0xff] %v615
      %677 = vst [vmem:[%s253 + $0x68] sm:$0xff] %v617
      %678 = vst [vmem:[%s253 + $0x70] sm:$0xff] %v620
      %679 = vst [vmem:[%s253 + $0x78] sm:$0xff] %v622
      %680 = vst [vmem:[%s253 + $0x80] sm:$0xff] %v625
      %681 = vst [vmem:[%s253 + $0x88] sm:$0xff] %v627
      %682 = vst [vmem:[%s253 + $0x90] sm:$0xff] %v630
      %683 = vst [vmem:[%s253 + $0x98] sm:$0xff] %v632
      %684 = vst [vmem:[%s253 + $0xa0] sm:$0xff] %v635
      %685 = vst [vmem:[%s253 + $0xa8] sm:$0xff] %v637
      %686 = vst [vmem:[%s253 + $0xb0] sm:$0xff] %v640
      %687 = vst [vmem:[%s253 + $0xb8] sm:$0xff] %v642
      %688 = vst [vmem:[%s253 + $0xc0] sm:$0xff] %v645
      %689 = vst [vmem:[%s253 + $0xc8] sm:$0xff] %v647
      %690 = vst [vmem:[%s253 + $0xd0] sm:$0xff] %v650
      %691 = vst [vmem:[%s253 + $0xd8] sm:$0xff] %v652
      %692 = vst [vmem:[%s253 + $0xe0] sm:$0xff] %v655
      %693 = vst [vmem:[%s253 + $0xe8] sm:$0xff] %v657
      %694 = vst [vmem:[%s253 + $0xf0] sm:$0xff] %v660
      %695 = vst [vmem:[%s253 + $0xf8] sm:$0xff] %v662
      %s696 = smul.u32 32, %s17
      %p697 = scmp.lt.s32.totalorder %s696, 63
      %s698 = scalar_select %p697, %s696, 63
      %s699 = smul.addr %s698, 8
      %s700 = scalar_lea.vmem %s6, %s699
      // Predicated region
      $region45: #{dual_conv.3} parent=43 // pred_check
        %p701 = pneg %p166
      $region46: #{dual_conv.3} parent=43 // pred_check_branch
        %703 = sbr.rel (%p701) target = $region48
      $region47: #{dual_conv.3} parent=43 // pred_region
        %s704 = smul.u32 32, %s17
      $region48: #{dual_conv.3} parent=43 // pred_fallthru
        _
    $region44: #{dual_conv.3} parent=5 // pred_fallthru
      _
    %p705 = scmp.le.s32.totalorder 2, %s12
    // Predicated region
    $region49: #{dual_conv.3} parent=5 // pred_check
      %p706 = pneg %p705
    $region50: #{dual_conv.3} parent=5 // pred_check_branch
      %708 = sbr.rel (%p706) target = $region52
    $region51: #{dual_conv.3} parent=5 // pred_region
      %s709 = ssub.s32 %s12, 2
      // Predicated region
      $region53: #{dual_conv.3} parent=51 // pred_check
        %p710 = pneg %p172
      $region54: #{dual_conv.3} parent=51 // pred_check_branch
        %712 = sbr.rel (%p710) target = $region56
      $region55: #{dual_conv.3} parent=51 // pred_region
        %s713 = smul.u32 32, %s18
        %p714 = scmp.lt.s32.totalorder %s713, 63
        %s715 = scalar_select %p714, %s713, 63
        %s716 = smul.addr %s715, 8
        %s717 = scalar_lea.vmem %s6, %s716
      $region56: #{dual_conv.3} parent=51 // pred_fallthru
        _
    $region52: #{dual_conv.3} parent=5 // pred_fallthru
      _
  $region6: #{dual_conv.3} parent=0 // loop_footer
    %s16 = sadd.s32 1, %s12
  $region7: #{dual_conv.3} parent=0 // loop_footer_branch
    %11 = sbr.rel target = $region3
  $region8: #{dual_conv.3} parent=0 // loop_exit
    _

</llo_original>
